<compile_context>
chip_gen: v7x
topology: tpu7x:2x2x1
jax: 0.10.0
libtpu: 0.0.40
codegen_flags: <defaults>
</compile_context>

<pallas_src>
import functools
import math

import jax
import jax.numpy as jnp
from jax.experimental import pallas as pl
from jax.experimental.pallas import tpu as pltpu


def _gat_kernel(h_ref, w_ref, a_ref, bias_ref, *rest,
                n_head, f_out, n_real, write_attn):
    # h_ref:    (1, n_pad, f_in)        bf16 (fetched once per batch)
    # w_ref:    (f_in, F=n_head*f_out)  bf16, all heads fused
    # a_ref:    (2, F)                  f32, row 0 = a_src, row 1 = a_dst (head-major)
    # bias_ref: (1, F)                  f32, bias tiled per head
    # out_ref:  (1, tq, F)              f32, packed lane-dense feature output
    # attn_ref: (1, n_head, tq, n_pad)  attention output (optional)
    # hp_ref:   (n_pad, F) bf16 scratch (h @ W for all heads of this batch)
    # dst_ref:  (n_head, n_pad) f32 scratch (a_dst scores as lane rows)
    if write_attn:
        out_ref, attn_ref, hp_ref, dst_ref = rest
    else:
        out_ref, hp_ref, dst_ref = rest
        attn_ref = None

    r = pl.program_id(1)
    tq = out_ref.shape[1]
    n_pad = hp_ref.shape[0]

    # Once per batch: fused projection for ALL heads (one wide MXU matmul) and the
    # destination attention terms; both stay resident across the row tiles.
    @pl.when(r == 0)
    def _():
        hp = jnp.dot(h_ref[0], w_ref[...], preferred_element_type=jnp.float32)  # (n_pad, F)
        hp_bf = hp.astype(jnp.bfloat16)
        hp_ref[...] = hp_bf
        hp_r = hp_bf.astype(jnp.float32)  # bf16-rounded, consistent with the src path
        for hd in range(n_head):
            lo = hd * f_out
            dcol = jnp.sum(hp_r[:, lo:lo + f_out] * a_ref[1:2, lo:lo + f_out],
                           axis=-1, keepdims=True)           # (n_pad, 1)
            dst_ref[hd:hd + 1, :] = jnp.transpose(dcol)       # (1, n_pad)

    row0 = pl.multiple_of(r * tq, tq)
    hp_q = hp_ref[pl.ds(row0, tq), :].astype(jnp.float32)     # (tq, F)

    outs = []
    for hd in range(n_head):
        lo = hd * f_out
        # attn_src for this head / row tile (VPU multiply + lane reduce).
        src_col = jnp.sum(hp_q[:, lo:lo + f_out] * a_ref[0:1, lo:lo + f_out],
                          axis=-1, keepdims=True)             # (tq, 1)
        # scores[i, j] = src[i] + dst[j]; softmax sees the FULL key dimension.
        scores = src_col + dst_ref[hd:hd + 1, :]              # (tq, n_pad)
        scores = jnp.where(scores >= 0, scores, 0.2 * scores)  # LeakyReLU(0.2)
        if n_pad != n_real:  # mask padded key columns
            col = jax.lax.broadcasted_iota(jnp.int32, scores.shape, 1)
            scores = jnp.where(col < n_real, scores, jnp.float32(-1e30))
        scores = scores - jnp.max(scores, axis=-1, keepdims=True)
        e = jnp.exp(scores)
        probs = e * pl.reciprocal(jnp.sum(e, axis=-1, keepdims=True), approx=True)
        if write_attn:
            attn_ref[0, hd] = probs.astype(attn_ref.dtype)
        outs.append(jnp.dot(probs.astype(jnp.bfloat16), hp_ref[:, lo:lo + f_out],
                            preferred_element_type=jnp.float32))  # (tq, f_out)

    # One lane-dense (tq, F) store instead of n_head masked 32-lane stores.
    out = jnp.concatenate(outs, axis=-1) + bias_ref[...]
    out_ref[0] = out.astype(out_ref.dtype)


def _r(x, m):
    return (x + m - 1) // m * m


def _vmem_capacity_bytes():
    # Generation-aware VMEM budget; fall back to the v7x-safe 64 MiB if the query
    # is unavailable (v5e/v6e report 128 MiB and get larger tiles / limits).
    try:
        info = pltpu.get_tpu_info()
        cap = getattr(info, "vmem_capacity_bytes", None) or getattr(info, "vmem_size_bytes", None)
        if cap and int(cap) >= (16 << 20):
            return int(cap)
    except Exception:
        pass
    return 64 << 20


def _plan_tiling(n, f_in, n_head, f_out, attn_bytes, return_attn, tile_override=None):
    """Pick (tq, n_pad) so that blocks + scratch + softmax temporaries fit VMEM."""
    F = n_head * f_out
    cap = _vmem_capacity_bytes()
    usable = int(cap * 0.8)

    def usage(tq, n_pad):
        fixed = (
            2 * _r(n_pad, 8) * _r(f_in, 128) * 2        # h block (bf16, double-buffered)
            + 2 * _r(f_in, 8) * _r(F, 128) * 2          # fused w block (bf16, double-buffered)
            + 4 * 8 * _r(F, 128) * 4                    # a + bias blocks
            + _r(n_pad, 16) * _r(F, 128) * 2            # hp scratch (bf16)
            + _r(n_head, 8) * _r(n_pad, 128) * 4        # dst scratch
            + 2 * _r(n_pad, 8) * _r(F, 128) * 4         # r==0 f32 temporaries (hp, prod)
        )
        per = (
            2 * _r(tq, 8) * _r(F, 128) * 4              # out block (f32, double-buffered)
            + 4 * _r(tq, 8) * _r(n_pad, 128) * 4        # softmax temporaries (scores/e/probs)
            + 2 * _r(tq, 8) * _r(F, 128) * 4            # per-head outs / concat temp
        )
        if return_attn:
            per += 2 * n_head * _r(tq, 8) * _r(n_pad, 128) * attn_bytes  # attn block, 2 bufs
        return fixed + per

    if tile_override is not None:
        tq, n_pad = tile_override
        assert n_pad >= n and n_pad % tq == 0 and tq % 8 == 0
        return tq, n_pad, usage(tq, n_pad), cap

    # Single tile for small graphs that fit comfortably.
    if n <= 1024 and usage(n, n) <= usable:
        return n, n, usage(n, n), cap

    candidates = [512, 256, 128, 64, 32, 16, 8]
    if return_attn and attn_bytes < 4:
        candidates.remove(8)  # keep sub-32-bit attention rows sublane-pack friendly
    for tq in candidates:
        n_pad = _r(n, tq)
        if usage(tq, n_pad) <= usable:
            return tq, n_pad, usage(tq, n_pad), cap
    tq = candidates[-1]
    n_pad = _r(n, tq)
    return tq, n_pad, usage(tq, n_pad), cap


def batch_multi_head_graph_attention(h, w, a_src, a_dst, bias=None, *,
                                     return_attn=True, attn_dtype=jnp.float32,
                                     tile_override=None):
    """h: (bs, n, f_in); w: (n_head, f_in, f_out); a_src/a_dst: (n_head, f_out, 1);
    bias: (f_out,) or None.
    Returns (output (bs, n_head, n, f_out) f32, attn (bs, n_head, n, n) or None)."""
    bs, n, f_in = h.shape
    n_head, _, f_out = w.shape
    F = n_head * f_out

    if bias is None:
        bias = jnp.zeros((f_out,), jnp.float32)
    bias_fused = jnp.tile(bias.astype(jnp.float32), n_head).reshape(1, F)

    # Head-fused packing: W -> (f_in, n_head*f_out); a_src/a_dst -> head-major rows.
    w_fused = jnp.transpose(w, (1, 0, 2)).reshape(f_in, F).astype(jnp.bfloat16)
    a_cat = jnp.stack([a_src.reshape(F), a_dst.reshape(F)], axis=0).astype(jnp.float32)

    attn_bytes = jnp.dtype(attn_dtype).itemsize
    tq, n_pad, usage_bytes, cap = _plan_tiling(
        n, f_in, n_head, f_out, attn_bytes, return_attn, tile_override)
    n_rt = n_pad // tq

    h_bf = h.astype(jnp.bfloat16)
    if n_pad != n:
        h_bf = jnp.pad(h_bf, ((0, 0), (0, n_pad - n), (0, 0)))

    vmem_limit = int(min(cap, max(32 << 20, usage_bytes + (8 << 20))))

    kernel = functools.partial(_gat_kernel, n_head=n_head, f_out=f_out,
                               n_real=n, write_attn=return_attn)

    out_shapes = [jax.ShapeDtypeStruct((bs, n_pad, F), jnp.float32)]
    out_specs = [pl.BlockSpec((1, tq, F), lambda b, r: (b, r, 0))]
    if return_attn:
        out_shapes.append(jax.ShapeDtypeStruct((bs, n_head, n_pad, n_pad), attn_dtype))
        out_specs.append(pl.BlockSpec((1, n_head, tq, n_pad), lambda b, r: (b, 0, r, 0)))

    fn = pl.pallas_call(
        kernel,
        out_shape=tuple(out_shapes),
        grid_spec=pltpu.PrefetchScalarGridSpec(
            num_scalar_prefetch=0,
            grid=(bs, n_rt),
            in_specs=[
                pl.BlockSpec((1, n_pad, f_in), lambda b, r: (b, 0, 0)),  # h (once per batch)
                pl.BlockSpec((f_in, F), lambda b, r: (0, 0)),            # fused W
                pl.BlockSpec((2, F), lambda b, r: (0, 0)),               # [a_src; a_dst]
                pl.BlockSpec((1, F), lambda b, r: (0, 0)),               # fused bias
            ],
            out_specs=out_specs,
            scratch_shapes=[
                pltpu.VMEM((n_pad, F), jnp.bfloat16),      # h @ W, all heads
                pltpu.VMEM((n_head, n_pad), jnp.float32),  # a_dst scores as lane rows
            ],
        ),
        compiler_params=pltpu.CompilerParams(
            dimension_semantics=("parallel", "arbitrary"),
            vmem_limit_bytes=vmem_limit,
        ),
    )
    results = fn(h_bf, w_fused, a_cat, bias_fused)

    if return_attn:
        out_packed, attn = results
        attn = attn[:, :, :n, :n]
    else:
        out_packed = results[0] if isinstance(results, (tuple, list)) else results
        attn = None

    out_packed = out_packed[:, :n, :]
    out = jnp.transpose(out_packed.reshape(bs, n, n_head, f_out), (0, 2, 1, 3))
    return out, attn


def _xavier_uniform(key, shape, gain):
    # PyTorch fan computation for >=2D tensors.
    receptive = 1
    for d in shape[2:]:
        receptive *= d
    fan_in = shape[1] * receptive
    fan_out = shape[0] * receptive
    bound = gain * math.sqrt(6.0 / (fan_in + fan_out))
    return jax.random.uniform(key, shape, jnp.float32, minval=-bound, maxval=bound)


def _reference(h, w, a_src, a_dst, bias):
    # Pure-JAX f32 reference mirroring the PyTorch forward.
    h_prime = jnp.einsum("bnf,hfo->bhno", h, w)
    attn_src = jnp.einsum("bhno,hoi->bhni", h_prime, a_src)
    attn_dst = jnp.einsum("bhno,hoi->bhni", h_prime, a_dst)
    attn = attn_src + jnp.swapaxes(attn_dst, -1, -2)
    attn = jnp.where(attn >= 0, attn, 0.2 * attn)
    attn = jax.nn.softmax(attn, axis=-1)
    out = jnp.einsum("bhnm,bhmo->bhno", attn, h_prime) + bias
    return out, attn


if __name__ == "__main__":
    # Small, deterministic configuration consistent with the module's forward.
    bs, n, f_in, f_out, n_head = 2, 8, 16, 32, 4
    attn_dropout = 0.0  # eval / no-op

    key = jax.random.PRNGKey(0)
    k_h, k_w, k_src, k_dst, k_h2 = jax.random.split(key, 5)

    h = jax.random.normal(k_h, (bs, n, f_in), jnp.float32)
    w = _xavier_uniform(k_w, (n_head, f_in, f_out), gain=1.414)
    a_src = _xavier_uniform(k_src, (n_head, f_out, 1), gain=1.414)
    a_dst = _xavier_uniform(k_dst, (n_head, f_out, 1), gain=1.414)
    bias = jnp.zeros((f_out,), jnp.float32)  # nn.init.constant_(bias, 0)

    out, attn = batch_multi_head_graph_attention(h, w, a_src, a_dst, bias)
    jax.block_until_ready((out, attn))

    out_ref, attn_ref = _reference(h, w, a_src, a_dst, bias)
    assert out.shape == (bs, n_head, n, f_out)
    assert attn.shape == (bs, n_head, n, n)
    # bf16 MXU operands + approx reciprocal loosen tolerances vs the f32 reference.
    assert jnp.allclose(attn, attn_ref, atol=2e-2, rtol=2e-2)
    assert jnp.allclose(out, out_ref, atol=5e-2, rtol=5e-2)

    # Also exercise the tiled + padded path (n not a multiple of the row tile).
    n2 = 20
    h2 = jax.random.normal(k_h2, (bs, n2, f_in), jnp.float32)
    out2, attn2 = batch_multi_head_graph_attention(
        h2, w, a_src, a_dst, bias, tile_override=(8, 24))
    jax.block_until_ready((out2, attn2))
    out2_ref, attn2_ref = _reference(h2, w, a_src, a_dst, bias)
    assert out2.shape == (bs, n_head, n2, f_out)
    assert attn2.shape == (bs, n_head, n2, n2)
    assert jnp.allclose(attn2, attn2_ref, atol=2e-2, rtol=2e-2)
    assert jnp.allclose(out2, out2_ref, atol=5e-2, rtol=5e-2)

    print("KERNEL_OK")
</pallas_src>

<mosaic_0001>
module attributes {stable_mosaic.version = 11 : i64} {
  func.func @_gat_kernel(%arg0: i32, %arg1: i32, %arg2: memref<1x8x16xbf16, #tpu.memory_space<vmem>>, %arg3: memref<16x128xbf16, #tpu.memory_space<vmem>>, %arg4: memref<2x128xf32, #tpu.memory_space<vmem>>, %arg5: memref<1x128xf32, #tpu.memory_space<vmem>>, %arg6: memref<1x8x128xf32, #tpu.memory_space<vmem>>, %arg7: memref<1x4x8x8xf32, #tpu.memory_space<vmem>>, %arg8: memref<8x128xbf16, #tpu.memory_space<vmem>>, %arg9: memref<4x8xf32, #tpu.memory_space<vmem>>) attributes {dimension_semantics = [#tpu.dimension_semantics<parallel>, #tpu.dimension_semantics<arbitrary>], iteration_bounds = array<i64: 2, 1>, scalar_prefetch = 0 : i64, scratch_operands = 2 : i64, tpu.core_type = #tpu.core_type<tc>, window_params = [{transform_indices = @transform_0, window_bounds = array<i64: 1, 8, 16>}, {pipeline_mode = #tpu.pipeline_mode<synchronous>, transform_indices = @transform_1, window_bounds = array<i64: 16, 128>}, {pipeline_mode = #tpu.pipeline_mode<synchronous>, transform_indices = @transform_2, window_bounds = array<i64: 2, 128>}, {pipeline_mode = #tpu.pipeline_mode<synchronous>, transform_indices = @transform_3, window_bounds = array<i64: 1, 128>}, {transform_indices = @transform_4, window_bounds = array<i64: 1, 8, 128>}, {transform_indices = @transform_5, window_bounds = array<i64: 1, 4, 8, 8>}]} {
    %c0_i32 = arith.constant 0 : i32
    %0 = arith.cmpi eq, %arg1, %c0_i32 : i32
    %1 = arith.extui %0 : i1 to i32
    %c0_i32_0 = arith.constant 0 : i32
    %2 = arith.cmpi ne, %1, %c0_i32_0 : i32
    scf.if %2 {
      %c0_63 = arith.constant 0 : index
      %c0_64 = arith.constant 0 : index
      %c0_65 = arith.constant 0 : index
      %139 = vector.load %arg2[%c0_63, %c0_64, %c0_65] : memref<1x8x16xbf16, #tpu.memory_space<vmem>>, vector<1x8x16xbf16>
      %140 = vector.shape_cast %139 : vector<1x8x16xbf16> to vector<8x16xbf16>
      %c0_66 = arith.constant 0 : index
      %c0_67 = arith.constant 0 : index
      %141 = vector.load %arg3[%c0_66, %c0_67] : memref<16x128xbf16, #tpu.memory_space<vmem>>, vector<16x128xbf16>
      %cst_68 = arith.constant dense<0.000000e+00> : vector<8x128xf32>
      %142 = tpu.matmul %140, %141, %cst_68 {dimension_numbers = #tpu.dot_dimension_numbers<[1], [0], [0], [1], [0, 0, 1, 1], [], []>} : vector<8x16xbf16>, vector<16x128xbf16>, vector<8x128xf32> -> vector<8x128xf32>
      %143 = arith.truncf %142 : vector<8x128xf32> to vector<8x128xbf16>
      %c0_69 = arith.constant 0 : index
      %c0_70 = arith.constant 0 : index
      %144 = vector.load %arg8[%c0_69, %c0_70] : memref<8x128xbf16, #tpu.memory_space<vmem>>, vector<8x128xbf16>
      tpu.vector_store %arg8[%c0_69, %c0_70], %143 {strides = array<i32>} : memref<8x128xbf16, #tpu.memory_space<vmem>>, vector<8x128xbf16>,
      %145 = arith.extf %143 : vector<8x128xbf16> to vector<8x128xf32>
      %146 = vector.extract_strided_slice %145 {offsets = [0, 0], sizes = [8, 32], strides = [1, 1]} : vector<8x128xf32> to vector<8x32xf32>
      %c1_71 = arith.constant 1 : index
      %c0_72 = arith.constant 0 : index
      %147 = vector.load %arg4[%c1_71, %c0_72] : memref<2x128xf32, #tpu.memory_space<vmem>>, vector<1x32xf32>
      %148 = vector.broadcast %147 : vector<1x32xf32> to vector<8x32xf32>
      %149 = arith.mulf %146, %148 : vector<8x32xf32>
      %cst_73 = arith.constant dense<0.000000e+00> : vector<8xf32>
      %150 = vector.multi_reduction <add>, %149, %cst_73 [1] : vector<8x32xf32> to vector<8xf32>
      %151 = vector.shape_cast %150 : vector<8xf32> to vector<8x1xf32>
      %152 = tpu.transpose %151, [1, 0] : vector<8x1xf32> -> vector<1x8xf32>
      %c0_74 = arith.constant 0 : index
      %c0_75 = arith.constant 0 : index
      %153 = vector.load %arg9[%c0_74, %c0_75] : memref<4x8xf32, #tpu.memory_space<vmem>>, vector<1x8xf32>
      tpu.vector_store %arg9[%c0_74, %c0_75], %152 {strides = array<i32>} : memref<4x8xf32, #tpu.memory_space<vmem>>, vector<1x8xf32>,
      %154 = vector.extract_strided_slice %145 {offsets = [0, 32], sizes = [8, 32], strides = [1, 1]} : vector<8x128xf32> to vector<8x32xf32>
      %c1_76 = arith.constant 1 : index
      %c32_77 = arith.constant 32 : index
      %155 = vector.load %arg4[%c1_76, %c32_77] : memref<2x128xf32, #tpu.memory_space<vmem>>, vector<1x32xf32>
      %156 = vector.broadcast %155 : vector<1x32xf32> to vector<8x32xf32>
      %157 = arith.mulf %154, %156 : vector<8x32xf32>
      %cst_78 = arith.constant dense<0.000000e+00> : vector<8xf32>
      %158 = vector.multi_reduction <add>, %157, %cst_78 [1] : vector<8x32xf32> to vector<8xf32>
      %159 = vector.shape_cast %158 : vector<8xf32> to vector<8x1xf32>
      %160 = tpu.transpose %159, [1, 0] : vector<8x1xf32> -> vector<1x8xf32>
      %c1_79 = arith.constant 1 : index
      %c0_80 = arith.constant 0 : index
      %161 = vector.load %arg9[%c1_79, %c0_80] : memref<4x8xf32, #tpu.memory_space<vmem>>, vector<1x8xf32>
      tpu.vector_store %arg9[%c1_79, %c0_80], %160 {strides = array<i32>} : memref<4x8xf32, #tpu.memory_space<vmem>>, vector<1x8xf32>,
      %162 = vector.extract_strided_slice %145 {offsets = [0, 64], sizes = [8, 32], strides = [1, 1]} : vector<8x128xf32> to vector<8x32xf32>
      %c1_81 = arith.constant 1 : index
      %c64_82 = arith.constant 64 : index
      %163 = vector.load %arg4[%c1_81, %c64_82] : memref<2x128xf32, #tpu.memory_space<vmem>>, vector<1x32xf32>
      %164 = vector.broadcast %163 : vector<1x32xf32> to vector<8x32xf32>
      %165 = arith.mulf %162, %164 : vector<8x32xf32>
      %cst_83 = arith.constant dense<0.000000e+00> : vector<8xf32>
      %166 = vector.multi_reduction <add>, %165, %cst_83 [1] : vector<8x32xf32> to vector<8xf32>
      %167 = vector.shape_cast %166 : vector<8xf32> to vector<8x1xf32>
      %168 = tpu.transpose %167, [1, 0] : vector<8x1xf32> -> vector<1x8xf32>
      %c2_84 = arith.constant 2 : index
      %c0_85 = arith.constant 0 : index
      %169 = vector.load %arg9[%c2_84, %c0_85] : memref<4x8xf32, #tpu.memory_space<vmem>>, vector<1x8xf32>
      tpu.vector_store %arg9[%c2_84, %c0_85], %168 {strides = array<i32>} : memref<4x8xf32, #tpu.memory_space<vmem>>, vector<1x8xf32>,
      %170 = vector.extract_strided_slice %145 {offsets = [0, 96], sizes = [8, 32], strides = [1, 1]} : vector<8x128xf32> to vector<8x32xf32>
      %c1_86 = arith.constant 1 : index
      %c96_87 = arith.constant 96 : index
      %171 = vector.load %arg4[%c1_86, %c96_87] : memref<2x128xf32, #tpu.memory_space<vmem>>, vector<1x32xf32>
      %172 = vector.broadcast %171 : vector<1x32xf32> to vector<8x32xf32>
      %173 = arith.mulf %170, %172 : vector<8x32xf32>
      %cst_88 = arith.constant dense<0.000000e+00> : vector<8xf32>
      %174 = vector.multi_reduction <add>, %173, %cst_88 [1] : vector<8x32xf32> to vector<8xf32>
      %175 = vector.shape_cast %174 : vector<8xf32> to vector<8x1xf32>
      %176 = tpu.transpose %175, [1, 0] : vector<8x1xf32> -> vector<1x8xf32>
      %c3_89 = arith.constant 3 : index
      %c0_90 = arith.constant 0 : index
      %177 = vector.load %arg9[%c3_89, %c0_90] : memref<4x8xf32, #tpu.memory_space<vmem>>, vector<1x8xf32>
      tpu.vector_store %arg9[%c3_89, %c0_90], %176 {strides = array<i32>} : memref<4x8xf32, #tpu.memory_space<vmem>>, vector<1x8xf32>,
    } else {
    }
    %c8_i32 = arith.constant 8 : i32
    %3 = arith.muli %arg1, %c8_i32 : i32
    %4 = tpu.assume_multiple %3, 8 : i32
    %5 = arith.index_cast %4 : i32 to index
    %c0 = arith.constant 0 : index
    %6 = vector.load %arg8[%5, %c0] : memref<8x128xbf16, #tpu.memory_space<vmem>>, vector<8x128xbf16>
    %7 = arith.extf %6 : vector<8x128xbf16> to vector<8x128xf32>
    %8 = vector.extract_strided_slice %7 {offsets = [0, 0], sizes = [8, 32], strides = [1, 1]} : vector<8x128xf32> to vector<8x32xf32>
    %c0_1 = arith.constant 0 : index
    %c0_2 = arith.constant 0 : index
    %9 = vector.load %arg4[%c0_1, %c0_2] : memref<2x128xf32, #tpu.memory_space<vmem>>, vector<1x32xf32>
    %10 = vector.broadcast %9 : vector<1x32xf32> to vector<8x32xf32>
    %11 = arith.mulf %8, %10 : vector<8x32xf32>
    %cst = arith.constant dense<0.000000e+00> : vector<8xf32>
    %12 = vector.multi_reduction <add>, %11, %cst [1] : vector<8x32xf32> to vector<8xf32>
    %13 = vector.shape_cast %12 : vector<8xf32> to vector<8x1xf32>
    %c0_3 = arith.constant 0 : index
    %c0_4 = arith.constant 0 : index
    %14 = vector.load %arg9[%c0_3, %c0_4] : memref<4x8xf32, #tpu.memory_space<vmem>>, vector<1x8xf32>
    %15 = vector.broadcast %13 : vector<8x1xf32> to vector<8x8xf32>
    %16 = vector.broadcast %14 : vector<1x8xf32> to vector<8x8xf32>
    %17 = arith.addf %15, %16 : vector<8x8xf32>
    %cst_5 = arith.constant 0.000000e+00 : f32
    %18 = vector.broadcast %cst_5 : f32 to vector<8x8xf32>
    %19 = arith.cmpf oge, %17, %18 : vector<8x8xf32>
    %cst_6 = arith.constant 2.000000e-01 : f32
    %20 = vector.broadcast %cst_6 : f32 to vector<8x8xf32>
    %21 = arith.mulf %20, %17 : vector<8x8xf32>
    %22 = arith.select %19, %17, %21 : vector<8x8xi1>, vector<8x8xf32>
    %cst_7 = arith.constant dense<0xFF800000> : vector<8xf32>
    %23 = vector.multi_reduction <maximumf>, %22, %cst_7 [1] : vector<8x8xf32> to vector<8xf32>
    %24 = vector.shape_cast %23 : vector<8xf32> to vector<8x1xf32>
    %25 = vector.broadcast %24 : vector<8x1xf32> to vector<8x8xf32>
    %26 = arith.subf %22, %25 : vector<8x8xf32>
    %27 = math.exp %26 : vector<8x8xf32>
    %cst_8 = arith.constant dense<0.000000e+00> : vector<8xf32>
    %28 = vector.multi_reduction <add>, %27, %cst_8 [1] : vector<8x8xf32> to vector<8xf32>
    %29 = vector.shape_cast %28 : vector<8xf32> to vector<8x1xf32>
    %30 = tpu.reciprocal %29 {approx = true} : vector<8x1xf32> -> vector<8x1xf32>
    %31 = vector.broadcast %30 : vector<8x1xf32> to vector<8x8xf32>
    %32 = arith.mulf %27, %31 : vector<8x8xf32>
    %c0_9 = arith.constant 0 : index
    %c0_10 = arith.constant 0 : index
    %c0_11 = arith.constant 0 : index
    %c0_12 = arith.constant 0 : index
    %33 = vector.load %arg7[%c0_9, %c0_10, %c0_11, %c0_12] : memref<1x4x8x8xf32, #tpu.memory_space<vmem>>, vector<1x1x8x8xf32>
    %34 = vector.shape_cast %33 : vector<1x1x8x8xf32> to vector<8x8xf32>
    %35 = vector.shape_cast %32 : vector<8x8xf32> to vector<1x1x8x8xf32>
    tpu.vector_store %arg7[%c0_9, %c0_10, %c0_11, %c0_12], %35 {strides = array<i32>} : memref<1x4x8x8xf32, #tpu.memory_space<vmem>>, vector<1x1x8x8xf32>,
    %36 = arith.truncf %32 : vector<8x8xf32> to vector<8x8xbf16>
    %c0_13 = arith.constant 0 : index
    %c0_14 = arith.constant 0 : index
    %37 = vector.load %arg8[%c0_13, %c0_14] : memref<8x128xbf16, #tpu.memory_space<vmem>>, vector<8x32xbf16>
    %cst_15 = arith.constant dense<0.000000e+00> : vector<8x32xf32>
    %38 = tpu.matmul %36, %37, %cst_15 {dimension_numbers = #tpu.dot_dimension_numbers<[1], [0], [0], [1], [0, 0, 1, 1], [], []>} : vector<8x8xbf16>, vector<8x32xbf16>, vector<8x32xf32> -> vector<8x32xf32>
    %39 = vector.extract_strided_slice %7 {offsets = [0, 32], sizes = [8, 32], strides = [1, 1]} : vector<8x128xf32> to vector<8x32xf32>
    %c0_16 = arith.constant 0 : index
    %c32 = arith.constant 32 : index
    %40 = vector.load %arg4[%c0_16, %c32] : memref<2x128xf32, #tpu.memory_space<vmem>>, vector<1x32xf32>
    %41 = vector.broadcast %40 : vector<1x32xf32> to vector<8x32xf32>
    %42 = arith.mulf %39, %41 : vector<8x32xf32>
    %cst_17 = arith.constant dense<0.000000e+00> : vector<8xf32>
    %43 = vector.multi_reduction <add>, %42, %cst_17 [1] : vector<8x32xf32> to vector<8xf32>
    %44 = vector.shape_cast %43 : vector<8xf32> to vector<8x1xf32>
    %c1 = arith.constant 1 : index
    %c0_18 = arith.constant 0 : index
    %45 = vector.load %arg9[%c1, %c0_18] : memref<4x8xf32, #tpu.memory_space<vmem>>, vector<1x8xf32>
    %46 = vector.broadcast %44 : vector<8x1xf32> to vector<8x8xf32>
    %47 = vector.broadcast %45 : vector<1x8xf32> to vector<8x8xf32>
    %48 = arith.addf %46, %47 : vector<8x8xf32>
    %cst_19 = arith.constant 0.000000e+00 : f32
    %49 = vector.broadcast %cst_19 : f32 to vector<8x8xf32>
    %50 = arith.cmpf oge, %48, %49 : vector<8x8xf32>
    %cst_20 = arith.constant 2.000000e-01 : f32
    %51 = vector.broadcast %cst_20 : f32 to vector<8x8xf32>
    %52 = arith.mulf %51, %48 : vector<8x8xf32>
    %53 = arith.select %50, %48, %52 : vector<8x8xi1>, vector<8x8xf32>
    %cst_21 = arith.constant dense<0xFF800000> : vector<8xf32>
    %54 = vector.multi_reduction <maximumf>, %53, %cst_21 [1] : vector<8x8xf32> to vector<8xf32>
    %55 = vector.shape_cast %54 : vector<8xf32> to vector<8x1xf32>
    %56 = vector.broadcast %55 : vector<8x1xf32> to vector<8x8xf32>
    %57 = arith.subf %53, %56 : vector<8x8xf32>
    %58 = math.exp %57 : vector<8x8xf32>
    %cst_22 = arith.constant dense<0.000000e+00> : vector<8xf32>
    %59 = vector.multi_reduction <add>, %58, %cst_22 [1] : vector<8x8xf32> to vector<8xf32>
    %60 = vector.shape_cast %59 : vector<8xf32> to vector<8x1xf32>
    %61 = tpu.reciprocal %60 {approx = true} : vector<8x1xf32> -> vector<8x1xf32>
    %62 = vector.broadcast %61 : vector<8x1xf32> to vector<8x8xf32>
    %63 = arith.mulf %58, %62 : vector<8x8xf32>
    %c0_23 = arith.constant 0 : index
    %c1_24 = arith.constant 1 : index
    %c0_25 = arith.constant 0 : index
    %c0_26 = arith.constant 0 : index
    %64 = vector.load %arg7[%c0_23, %c1_24, %c0_25, %c0_26] : memref<1x4x8x8xf32, #tpu.memory_space<vmem>>, vector<1x1x8x8xf32>
    %65 = vector.shape_cast %64 : vector<1x1x8x8xf32> to vector<8x8xf32>
    %66 = vector.shape_cast %63 : vector<8x8xf32> to vector<1x1x8x8xf32>
    tpu.vector_store %arg7[%c0_23, %c1_24, %c0_25, %c0_26], %66 {strides = array<i32>} : memref<1x4x8x8xf32, #tpu.memory_space<vmem>>, vector<1x1x8x8xf32>,
    %67 = arith.truncf %63 : vector<8x8xf32> to vector<8x8xbf16>
    %c0_27 = arith.constant 0 : index
    %c32_28 = arith.constant 32 : index
    %68 = vector.load %arg8[%c0_27, %c32_28] : memref<8x128xbf16, #tpu.memory_space<vmem>>, vector<8x32xbf16>
    %cst_29 = arith.constant dense<0.000000e+00> : vector<8x32xf32>
    %69 = tpu.matmul %67, %68, %cst_29 {dimension_numbers = #tpu.dot_dimension_numbers<[1], [0], [0], [1], [0, 0, 1, 1], [], []>} : vector<8x8xbf16>, vector<8x32xbf16>, vector<8x32xf32> -> vector<8x32xf32>
    %70 = vector.extract_strided_slice %7 {offsets = [0, 64], sizes = [8, 32], strides = [1, 1]} : vector<8x128xf32> to vector<8x32xf32>
    %c0_30 = arith.constant 0 : index
    %c64 = arith.constant 64 : index
    %71 = vector.load %arg4[%c0_30, %c64] : memref<2x128xf32, #tpu.memory_space<vmem>>, vector<1x32xf32>
    %72 = vector.broadcast %71 : vector<1x32xf32> to vector<8x32xf32>
    %73 = arith.mulf %70, %72 : vector<8x32xf32>
    %cst_31 = arith.constant dense<0.000000e+00> : vector<8xf32>
    %74 = vector.multi_reduction <add>, %73, %cst_31 [1] : vector<8x32xf32> to vector<8xf32>
    %75 = vector.shape_cast %74 : vector<8xf32> to vector<8x1xf32>
    %c2 = arith.constant 2 : index
    %c0_32 = arith.constant 0 : index
    %76 = vector.load %arg9[%c2, %c0_32] : memref<4x8xf32, #tpu.memory_space<vmem>>, vector<1x8xf32>
    %77 = vector.broadcast %75 : vector<8x1xf32> to vector<8x8xf32>
    %78 = vector.broadcast %76 : vector<1x8xf32> to vector<8x8xf32>
    %79 = arith.addf %77, %78 : vector<8x8xf32>
    %cst_33 = arith.constant 0.000000e+00 : f32
    %80 = vector.broadcast %cst_33 : f32 to vector<8x8xf32>
    %81 = arith.cmpf oge, %79, %80 : vector<8x8xf32>
    %cst_34 = arith.constant 2.000000e-01 : f32
    %82 = vector.broadcast %cst_34 : f32 to vector<8x8xf32>
    %83 = arith.mulf %82, %79 : vector<8x8xf32>
    %84 = arith.select %81, %79, %83 : vector<8x8xi1>, vector<8x8xf32>
    %cst_35 = arith.constant dense<0xFF800000> : vector<8xf32>
    %85 = vector.multi_reduction <maximumf>, %84, %cst_35 [1] : vector<8x8xf32> to vector<8xf32>
    %86 = vector.shape_cast %85 : vector<8xf32> to vector<8x1xf32>
    %87 = vector.broadcast %86 : vector<8x1xf32> to vector<8x8xf32>
    %88 = arith.subf %84, %87 : vector<8x8xf32>
    %89 = math.exp %88 : vector<8x8xf32>
    %cst_36 = arith.constant dense<0.000000e+00> : vector<8xf32>
    %90 = vector.multi_reduction <add>, %89, %cst_36 [1] : vector<8x8xf32> to vector<8xf32>
    %91 = vector.shape_cast %90 : vector<8xf32> to vector<8x1xf32>
    %92 = tpu.reciprocal %91 {approx = true} : vector<8x1xf32> -> vector<8x1xf32>
    %93 = vector.broadcast %92 : vector<8x1xf32> to vector<8x8xf32>
    %94 = arith.mulf %89, %93 : vector<8x8xf32>
    %c0_37 = arith.constant 0 : index
    %c2_38 = arith.constant 2 : index
    %c0_39 = arith.constant 0 : index
    %c0_40 = arith.constant 0 : index
    %95 = vector.load %arg7[%c0_37, %c2_38, %c0_39, %c0_40] : memref<1x4x8x8xf32, #tpu.memory_space<vmem>>, vector<1x1x8x8xf32>
    %96 = vector.shape_cast %95 : vector<1x1x8x8xf32> to vector<8x8xf32>
    %97 = vector.shape_cast %94 : vector<8x8xf32> to vector<1x1x8x8xf32>
    tpu.vector_store %arg7[%c0_37, %c2_38, %c0_39, %c0_40], %97 {strides = array<i32>} : memref<1x4x8x8xf32, #tpu.memory_space<vmem>>, vector<1x1x8x8xf32>,
    %98 = arith.truncf %94 : vector<8x8xf32> to vector<8x8xbf16>
    %c0_41 = arith.constant 0 : index
    %c64_42 = arith.constant 64 : index
    %99 = vector.load %arg8[%c0_41, %c64_42] : memref<8x128xbf16, #tpu.memory_space<vmem>>, vector<8x32xbf16>
    %cst_43 = arith.constant dense<0.000000e+00> : vector<8x32xf32>
    %100 = tpu.matmul %98, %99, %cst_43 {dimension_numbers = #tpu.dot_dimension_numbers<[1], [0], [0], [1], [0, 0, 1, 1], [], []>} : vector<8x8xbf16>, vector<8x32xbf16>, vector<8x32xf32> -> vector<8x32xf32>
    %101 = vector.extract_strided_slice %7 {offsets = [0, 96], sizes = [8, 32], strides = [1, 1]} : vector<8x128xf32> to vector<8x32xf32>
    %c0_44 = arith.constant 0 : index
    %c96 = arith.constant 96 : index
    %102 = vector.load %arg4[%c0_44, %c96] : memref<2x128xf32, #tpu.memory_space<vmem>>, vector<1x32xf32>
    %103 = vector.broadcast %102 : vector<1x32xf32> to vector<8x32xf32>
    %104 = arith.mulf %101, %103 : vector<8x32xf32>
    %cst_45 = arith.constant dense<0.000000e+00> : vector<8xf32>
    %105 = vector.multi_reduction <add>, %104, %cst_45 [1] : vector<8x32xf32> to vector<8xf32>
    %106 = vector.shape_cast %105 : vector<8xf32> to vector<8x1xf32>
    %c3 = arith.constant 3 : index
    %c0_46 = arith.constant 0 : index
    %107 = vector.load %arg9[%c3, %c0_46] : memref<4x8xf32, #tpu.memory_space<vmem>>, vector<1x8xf32>
    %108 = vector.broadcast %106 : vector<8x1xf32> to vector<8x8xf32>
    %109 = vector.broadcast %107 : vector<1x8xf32> to vector<8x8xf32>
    %110 = arith.addf %108, %109 : vector<8x8xf32>
    %cst_47 = arith.constant 0.000000e+00 : f32
    %111 = vector.broadcast %cst_47 : f32 to vector<8x8xf32>
    %112 = arith.cmpf oge, %110, %111 : vector<8x8xf32>
    %cst_48 = arith.constant 2.000000e-01 : f32
    %113 = vector.broadcast %cst_48 : f32 to vector<8x8xf32>
    %114 = arith.mulf %113, %110 : vector<8x8xf32>
    %115 = arith.select %112, %110, %114 : vector<8x8xi1>, vector<8x8xf32>
    %cst_49 = arith.constant dense<0xFF800000> : vector<8xf32>
    %116 = vector.multi_reduction <maximumf>, %115, %cst_49 [1] : vector<8x8xf32> to vector<8xf32>
    %117 = vector.shape_cast %116 : vector<8xf32> to vector<8x1xf32>
    %118 = vector.broadcast %117 : vector<8x1xf32> to vector<8x8xf32>
    %119 = arith.subf %115, %118 : vector<8x8xf32>
    %120 = math.exp %119 : vector<8x8xf32>
    %cst_50 = arith.constant dense<0.000000e+00> : vector<8xf32>
    %121 = vector.multi_reduction <add>, %120, %cst_50 [1] : vector<8x8xf32> to vector<8xf32>
    %122 = vector.shape_cast %121 : vector<8xf32> to vector<8x1xf32>
    %123 = tpu.reciprocal %122 {approx = true} : vector<8x1xf32> -> vector<8x1xf32>
    %124 = vector.broadcast %123 : vector<8x1xf32> to vector<8x8xf32>
    %125 = arith.mulf %120, %124 : vector<8x8xf32>
    %c0_51 = arith.constant 0 : index
    %c3_52 = arith.constant 3 : index
    %c0_53 = arith.constant 0 : index
    %c0_54 = arith.constant 0 : index
    %126 = vector.load %arg7[%c0_51, %c3_52, %c0_53, %c0_54] : memref<1x4x8x8xf32, #tpu.memory_space<vmem>>, vector<1x1x8x8xf32>
    %127 = vector.shape_cast %126 : vector<1x1x8x8xf32> to vector<8x8xf32>
    %128 = vector.shape_cast %125 : vector<8x8xf32> to vector<1x1x8x8xf32>
    tpu.vector_store %arg7[%c0_51, %c3_52, %c0_53, %c0_54], %128 {strides = array<i32>} : memref<1x4x8x8xf32, #tpu.memory_space<vmem>>, vector<1x1x8x8xf32>,
    %129 = arith.truncf %125 : vector<8x8xf32> to vector<8x8xbf16>
    %c0_55 = arith.constant 0 : index
    %c96_56 = arith.constant 96 : index
    %130 = vector.load %arg8[%c0_55, %c96_56] : memref<8x128xbf16, #tpu.memory_space<vmem>>, vector<8x32xbf16>
    %cst_57 = arith.constant dense<0.000000e+00> : vector<8x32xf32>
    %131 = tpu.matmul %129, %130, %cst_57 {dimension_numbers = #tpu.dot_dimension_numbers<[1], [0], [0], [1], [0, 0, 1, 1], [], []>} : vector<8x8xbf16>, vector<8x32xbf16>, vector<8x32xf32> -> vector<8x32xf32>
    %132 = tpu.concatenate %38, %69, %100, %131 in 1 : vector<8x32xf32>, vector<8x32xf32>, vector<8x32xf32>, vector<8x32xf32> -> vector<8x128xf32>
    %c0_58 = arith.constant 0 : index
    %c0_59 = arith.constant 0 : index
    %133 = vector.load %arg5[%c0_58, %c0_59] : memref<1x128xf32, #tpu.memory_space<vmem>>, vector<1x128xf32>
    %134 = vector.broadcast %133 : vector<1x128xf32> to vector<8x128xf32>
    %135 = arith.addf %132, %134 : vector<8x128xf32>
    %c0_60 = arith.constant 0 : index
    %c0_61 = arith.constant 0 : index
    %c0_62 = arith.constant 0 : index
    %136 = vector.load %arg6[%c0_60, %c0_61, %c0_62] : memref<1x8x128xf32, #tpu.memory_space<vmem>>, vector<1x8x128xf32>
    %137 = vector.shape_cast %136 : vector<1x8x128xf32> to vector<8x128xf32>
    %138 = vector.shape_cast %135 : vector<8x128xf32> to vector<1x8x128xf32>
    tpu.vector_store %arg6[%c0_60, %c0_61, %c0_62], %138 {strides = array<i32>} : memref<1x8x128xf32, #tpu.memory_space<vmem>>, vector<1x8x128xf32>,
    return
  }
  func.func @transform_0(%arg0: i32, %arg1: i32) -> (i32, i32, i32) {
    %c0_i32 = arith.constant 0 : i32
    %c0_i32_0 = arith.constant 0 : i32
    %c0_i32_1 = arith.constant 0 : i32
    return %arg0, %c0_i32, %c0_i32_0 : i32, i32, i32
  }
  func.func @transform_1(%arg0: i32, %arg1: i32) -> (i32, i32) {
    %c0_i32 = arith.constant 0 : i32
    %c0_i32_0 = arith.constant 0 : i32
    %c0_i32_1 = arith.constant 0 : i32
    return %c0_i32, %c0_i32_0 : i32, i32
  }
  func.func @transform_2(%arg0: i32, %arg1: i32) -> (i32, i32) {
    %c0_i32 = arith.constant 0 : i32
    %c0_i32_0 = arith.constant 0 : i32
    %c0_i32_1 = arith.constant 0 : i32
    return %c0_i32, %c0_i32_0 : i32, i32
  }
  func.func @transform_3(%arg0: i32, %arg1: i32) -> (i32, i32) {
    %c0_i32 = arith.constant 0 : i32
    %c0_i32_0 = arith.constant 0 : i32
    %c0_i32_1 = arith.constant 0 : i32
    return %c0_i32, %c0_i32_0 : i32, i32
  }
  func.func @transform_4(%arg0: i32, %arg1: i32) -> (i32, i32, i32) {
    %c0_i32 = arith.constant 0 : i32
    %c0_i32_0 = arith.constant 0 : i32
    return %arg0, %arg1, %c0_i32 : i32, i32, i32
  }
  func.func @transform_5(%arg0: i32, %arg1: i32) -> (i32, i32, i32, i32) {
    %c0_i32 = arith.constant 0 : i32
    %c0_i32_0 = arith.constant 0 : i32
    %c0_i32_1 = arith.constant 0 : i32
    return %arg0, %c0_i32, %arg1, %c0_i32_0 : i32, i32, i32, i32
  }
}

</mosaic_0001>

<llo_original>
// kernel: tpu_custom_call.1
$region0: #{tpu_custom_call.1}
  #allocation0 [shape = 'u32[]', space=smem, size = 0x4, offset = 0x4, fixed_abs, tag = 'smem constant byte address 0x4 - core index']
  #allocation1 [shape = 'u32[144,128]{1,0:T(1,128)}', space=vmem, size = 0x12000, scoped, tag = 'internal scratch']
  #allocation2 [shape = 'bf16[8,128]{1,0:T(8,128)(2,1)}', space=vmem, size = 0x800, scoped, tag = 'scratch operand']
  #allocation3 [shape = 'f32[4,8]{1,0:T(4,128)}', space=vmem, size = 0x800, scoped, tag = 'scratch operand']
  %s0 = inlined_call_operand.hbm [shape: bf16[2,8,16], index: 0, kind: input, shape index: {}]
  %s1 = inlined_call_operand.hbm [shape: bf16[16,128], index: 1, kind: input, shape index: {}]
  %s2 = inlined_call_operand.vmem [shape: f32[2,128], index: 2, kind: input, shape index: {}]
  %s3 = inlined_call_operand.vmem [shape: f32[1,128], index: 3, kind: input, shape index: {}]
  %s4 = inlined_call_operand.hbm [shape: f32[2,8,128], index: 4, kind: output, shape index: {0}]
  %s5 = inlined_call_operand.hbm [shape: f32[2,4,8,8], index: 5, kind: output, shape index: {1}]
  %6 = xla_tuple %s4, %s5
  %s7 = sld [smem:[#allocation0]]
  $region69: #{tpu_custom_call.1} parent=0
    _
  %s9 = ssub.s32 1, %s7
  %s10 = scalar_select 0, %s9, %s7
  $region1: #{tpu_custom_call.1} parent=0
    #allocation4 [shape = 'u8[4096]{0}', space=vmem, size = 0x1000, scoped, tag = 'input window, operand 0']
    #allocation5 [shape = 's32[2]{0}', space=sflag, size = 0x8, scoped, tag = 'scoped memory for tpu_custom_call.1']
    #allocation6 [shape = 's32[2]{0}', space=sflag, size = 0x8, scoped, tag = 'scoped memory for tpu_custom_call.1']
    #allocation7 [shape = 'u8[4096]{0}', space=vmem, size = 0x1000, scoped, tag = 'input window, operand 1, single buffered']
    #allocation8 [shape = 's32[1]{0}', space=sflag, size = 0x4, scoped, tag = 'scoped memory for tpu_custom_call.1']
    #allocation9 [shape = 'u8[8192]{0}', space=vmem, size = 0x2000, scoped, tag = 'output window, operand 0']
    #allocation10 [shape = 'u8[32768]{0}', space=vmem, size = 0x8000, scoped, tag = 'output window, operand 1']
    #allocation11 [shape = 's32[2]{0}', space=sflag, size = 0x8, scoped, tag = 'scoped memory for tpu_custom_call.1']
    %11 = vsyncpa [#allocation5], 0
    %s12 = scalar_lea.sflag [#allocation5], 1
    %13 = vsyncpa %s12, 0
    %14 = vsyncpa [#allocation8], 0
    %15 = vsyncpa [#allocation6], 0
    %s16 = scalar_lea.sflag [#allocation6], 1
    %17 = vsyncpa %s16, 0
    %18 = vsyncpa [#allocation11], 0
    %s19 = scalar_lea.sflag [#allocation11], 1
    %20 = vsyncpa %s19, 0
    loop: start=0, step=1, limit=4
    $region2: #{tpu_custom_call.1} parent=1 // loop_pre_header
      _
    $region3: #{tpu_custom_call.1} parent=1 // loop_header
      %s22 = sphi 0, %s26
      %p23 = scmp.ge.s32.totalorder %s22, 4
      %s29 = sphi 0, %s41
      %s30 = sphi 0, %s37
      %s31 = sphi 0, %s29
      %s32 = sphi 0, %s30
      %s33 = sphi 0, %s31
      %s34 = sphi 0, %s32
      %s44 = sphi 0, %s46
      %s47 = sphi 0, %s44
      %s48 = sphi 0, %s47
      %s64 = sphi 0, %s48
      %s68 = sphi 0, %s68
      %s70 = sphi 0, %s68
      %s71 = sphi 0, %s70
      %s85 = sphi 0, %s71
      %s89 = sphi 0, %s89
      %s91 = sphi 0, %s89
      %s92 = sphi 0, %s91
      %s106 = sphi 0, %s92
      %s110 = sphi 0, %s110
      %s112 = sphi 0, %s110
      %s113 = sphi 0, %s112
      %s127 = sphi 0, %s113
      %s135 = sphi 0, %s137
      %s138 = sphi 0, %s135
      %s139 = sphi 0, %s138
      %s155 = sphi 0, %s139
      %s163 = sphi 0, %s165
      %s166 = sphi 0, %s163
      %s167 = sphi 0, %s166
      %s183 = sphi 0, %s167
    $region4: #{tpu_custom_call.1} parent=1 // loop_header_branch
      %25 = sbr.rel (%p23) target = $region8
    $region5: #{tpu_custom_call.1} parent=1 // loop_body
      %s27 = ssub.s32 %s22, 1
      %s28 = ssub.s32 %s22, 2
      %s35 = sadd.s32 1, %s30
      %p36 = scmp.ge.s32.totalorder %s35, 1
      %s37 = scalar_select %p36, 0, %s35
      %s38 = sadd.s32 1, %s29
      %s39 = scalar_select %p36, %s38, %s29
      %p40 = scmp.ge.s32.totalorder %s39, 2
      %s41 = scalar_select %p40, 0, %s39
      %s42 = ssub.s32 %s29, %s41
      %p43 = scmp.eq.s32.totalorder %s42, 0
      %s45 = sadd.s32 %s44, 1
      %s46 = scalar_select %p43, %s44, %s45
      %p49 = pneg %p43
      %p50 = scmp.eq.s32.totalorder %s22, 1
      %p51 = por %p49, %p50
      %p52 = scmp.ne.s32.totalorder %s44, %s47
      %p53 = scmp.eq.s32.totalorder %s22, 0
      %p54 = por %p52, %p53
      %p55 = scmp.ne.s32.totalorder %s44, %s47
      %p56 = scmp.eq.s32.totalorder %s27, 1
      %p57 = por %p55, %p56
      %p58 = scmp.ne.s32.totalorder %s47, %s48
      %p59 = scmp.eq.s32.totalorder %s27, 0
      %p60 = por %p58, %p59
      %p61 = scmp.ne.s32.totalorder %s47, %s48
      %p62 = scmp.eq.s32.totalorder %s28, 1
      %p63 = por %p61, %p62
      %p65 = scmp.ne.s32.totalorder %s48, %s64
      %p66 = scmp.eq.s32.totalorder %s28, 0
      %p67 = por %p65, %p66
      %s69 = sadd.s32 %s68, 1
      %p72 = scmp.eq.s32.totalorder %s22, 1
      %p73 = scmp.ne.s32.totalorder %s68, %s70
      %p74 = scmp.eq.s32.totalorder %s22, 0
      %p75 = por %p73, %p74
      %p76 = scmp.ne.s32.totalorder %s68, %s70
      %p77 = scmp.eq.s32.totalorder %s27, 1
      %p78 = por %p76, %p77
      %p79 = scmp.ne.s32.totalorder %s70, %s71
      %p80 = scmp.eq.s32.totalorder %s27, 0
      %p81 = por %p79, %p80
      %p82 = scmp.ne.s32.totalorder %s70, %s71
      %p83 = scmp.eq.s32.totalorder %s28, 1
      %p84 = por %p82, %p83
      %p86 = scmp.ne.s32.totalorder %s71, %s85
      %p87 = scmp.eq.s32.totalorder %s28, 0
      %p88 = por %p86, %p87
      %s90 = sadd.s32 %s89, 1
      %p93 = scmp.eq.s32.totalorder %s22, 1
      %p94 = scmp.ne.s32.totalorder %s89, %s91
      %p95 = scmp.eq.s32.totalorder %s22, 0
      %p96 = por %p94, %p95
      %p97 = scmp.ne.s32.totalorder %s89, %s91
      %p98 = scmp.eq.s32.totalorder %s27, 1
      %p99 = por %p97, %p98
      %p100 = scmp.ne.s32.totalorder %s91, %s92
      %p101 = scmp.eq.s32.totalorder %s27, 0
      %p102 = por %p100, %p101
      %p103 = scmp.ne.s32.totalorder %s91, %s92
      %p104 = scmp.eq.s32.totalorder %s28, 1
      %p105 = por %p103, %p104
      %p107 = scmp.ne.s32.totalorder %s92, %s106
      %p108 = scmp.eq.s32.totalorder %s28, 0
      %p109 = por %p107, %p108
      %s111 = sadd.s32 %s110, 1
      %p114 = scmp.eq.s32.totalorder %s22, 1
      %p115 = scmp.ne.s32.totalorder %s110, %s112
      %p116 = scmp.eq.s32.totalorder %s22, 0
      %p117 = por %p115, %p116
      %p118 = scmp.ne.s32.totalorder %s110, %s112
      %p119 = scmp.eq.s32.totalorder %s27, 1
      %p120 = por %p118, %p119
      %p121 = scmp.ne.s32.totalorder %s112, %s113
      %p122 = scmp.eq.s32.totalorder %s27, 0
      %p123 = por %p121, %p122
      %p124 = scmp.ne.s32.totalorder %s112, %s113
      %p125 = scmp.eq.s32.totalorder %s28, 1
      %p126 = por %p124, %p125
      %p128 = scmp.ne.s32.totalorder %s113, %s127
      %p129 = scmp.eq.s32.totalorder %s28, 0
      %p130 = por %p128, %p129
      %s131 = ssub.s32 %s29, %s41
      %s132 = ssub.s32 %s30, %s37
      %s133 = sor.u32 %s131, %s132
      %p134 = scmp.eq.s32.totalorder %s133, 0
      %s136 = sadd.s32 %s135, 1
      %s137 = scalar_select %p134, %s135, %s136
      %p140 = pneg %p134
      %p141 = scmp.eq.s32.totalorder %s22, 1
      %p142 = por %p140, %p141
      %p143 = scmp.ne.s32.totalorder %s135, %s138
      %p144 = scmp.eq.s32.totalorder %s22, 0
      %p145 = por %p143, %p144
      %p146 = scmp.ne.s32.totalorder %s135, %s138
      %p147 = scmp.eq.s32.totalorder %s27, 1
      %p148 = por %p146, %p147
      %p149 = scmp.ne.s32.totalorder %s138, %s139
      %p150 = scmp.eq.s32.totalorder %s27, 0
      %p151 = por %p149, %p150
      %p152 = scmp.ne.s32.totalorder %s138, %s139
      %p153 = scmp.eq.s32.totalorder %s28, 1
      %p154 = por %p152, %p153
      %p156 = scmp.ne.s32.totalorder %s139, %s155
      %p157 = scmp.eq.s32.totalorder %s28, 0
      %p158 = por %p156, %p157
      %s159 = ssub.s32 %s29, %s41
      %s160 = ssub.s32 %s30, %s37
      %s161 = sor.u32 %s159, %s160
      %p162 = scmp.eq.s32.totalorder %s161, 0
      %s164 = sadd.s32 %s163, 1
      %s165 = scalar_select %p162, %s163, %s164
      %p168 = pneg %p162
      %p169 = scmp.eq.s32.totalorder %s22, 1
      %p170 = por %p168, %p169
      %p171 = scmp.ne.s32.totalorder %s163, %s166
      %p172 = scmp.eq.s32.totalorder %s22, 0
      %p173 = por %p171, %p172
      %p174 = scmp.ne.s32.totalorder %s163, %s166
      %p175 = scmp.eq.s32.totalorder %s27, 1
      %p176 = por %p174, %p175
      %p177 = scmp.ne.s32.totalorder %s166, %s167
      %p178 = scmp.eq.s32.totalorder %s27, 0
      %p179 = por %p177, %p178
      %p180 = scmp.ne.s32.totalorder %s166, %s167
      %p181 = scmp.eq.s32.totalorder %s28, 1
      %p182 = por %p180, %p181
      %p184 = scmp.ne.s32.totalorder %s167, %s183
      %p185 = scmp.eq.s32.totalorder %s28, 0
      %p186 = por %p184, %p185
      %p187 = scmp.le.s32.totalorder 1, %s22
      %p188 = scmp.lt.s32.totalorder %s22, 3
      %p189 = pnand %p187, %p188
      %p190 = pneg %p189
      // Predicated region
      $region9: #{tpu_custom_call.1} parent=5 // pred_check
        _
      $region10: #{tpu_custom_call.1} parent=5 // pred_check_branch
        %192 = sbr.rel (%p189) target = $region12
      $region11: #{tpu_custom_call.1} parent=5 // pred_region
        %s193 = ssub.s32 %s22, 1
        // Predicated region
        $region13: #{tpu_custom_call.1} parent=11 // pred_check
          %p194 = pneg %p81
        $region14: #{tpu_custom_call.1} parent=11 // pred_check_branch
          %196 = sbr.rel (%p194) target = $region16
        $region15: #{tpu_custom_call.1} parent=11 // pred_region
          %s198 = ssub.s32 128, 128
          %199 = vsyncadd [#allocation8], %s198
          %s200 = sshll.u32 [#allocation7], 4
          %s201 = int_to_ptr.vmem [resolvable:$true] %s200
          %206 = dma.hbm_to_vmem [thread:$0]  %s1, 128, %s201, [#allocation8], 64, 64, 4
        $region16: #{tpu_custom_call.1} parent=11 // pred_fallthru
          _
        // Predicated region
        $region17: #{tpu_custom_call.1} parent=11 // pred_check
          %p207 = pneg %p102
        $region18: #{tpu_custom_call.1} parent=11 // pred_check_branch
          %209 = sbr.rel (%p207) target = $region20
        $region19: #{tpu_custom_call.1} parent=11 // pred_region
          _
        $region20: #{tpu_custom_call.1} parent=11 // pred_fallthru
          _
        // Predicated region
        $region21: #{tpu_custom_call.1} parent=11 // pred_check
          %p210 = pneg %p123
        $region22: #{tpu_custom_call.1} parent=11 // pred_check_branch
          %212 = sbr.rel (%p210) target = $region24
        $region23: #{tpu_custom_call.1} parent=11 // pred_region
          _
        $region24: #{tpu_custom_call.1} parent=11 // pred_fallthru
          _
      $region12: #{tpu_custom_call.1} parent=5 // pred_fallthru
        _
      %p213 = scmp.lt.s32.totalorder %s22, 2
      // Predicated region
      $region25: #{tpu_custom_call.1} parent=5 // pred_check
        %p214 = pneg %p213
      $region26: #{tpu_custom_call.1} parent=5 // pred_check_branch
        %216 = sbr.rel (%p214) target = $region28
      $region27: #{tpu_custom_call.1} parent=5 // pred_region
        // Predicated region
        $region29: #{tpu_custom_call.1} parent=27 // pred_check
          %p217 = pneg %p54
        $region30: #{tpu_custom_call.1} parent=27 // pred_check_branch
          %219 = sbr.rel (%p217) target = $region32
        $region31: #{tpu_custom_call.1} parent=27 // pred_region
          %s220 = sand.u32 %s44, 1
          %s221 = scalar_lea.sflag [#allocation5], %s220
          %s222 = sand.u32 %s44, 1
          %s223 = smul.addr %s222, 4
          %s224 = scalar_lea.vmem [#allocation4], %s223
          %s226 = ssub.s32 64, 64
          %227 = vsyncadd %s221, %s226
          %s228 = smul.addr %s29, 64
          %s229 = scalar_lea.hbm %s0, %s228
          %s231 = sshll.u32 %s224, 4
          %s232 = int_to_ptr.vmem [resolvable:$true] %s231
          %234 = dma.hbm_to_vmem [thread:$0]  %s229, 64, %s232, %s221
        $region32: #{tpu_custom_call.1} parent=27 // pred_fallthru
          _
      $region28: #{tpu_custom_call.1} parent=5 // pred_fallthru
        _
      %p235 = scmp.le.s32.totalorder 1, %s22
      %p236 = scmp.lt.s32.totalorder %s22, 3
      %p237 = pnand %p235, %p236
      %p238 = pneg %p237
      // Predicated region
      $region33: #{tpu_custom_call.1} parent=5 // pred_check
        _
      $region34: #{tpu_custom_call.1} parent=5 // pred_check_branch
        %240 = sbr.rel (%p237) target = $region36
      $region35: #{tpu_custom_call.1} parent=5 // pred_region
        %s241 = ssub.s32 %s22, 1
        %s242 = sand.u32 %s47, 1
        %s243 = scalar_lea.sflag [#allocation5], %s242
        %s244 = sand.u32 %s47, 1
        %s245 = smul.addr %s244, 4
        %s246 = scalar_lea.vmem [#allocation4], %s245
        // Predicated region
        $region37: #{tpu_custom_call.1} parent=35 // pred_check
          %p247 = pneg %p60
        $region38: #{tpu_custom_call.1} parent=35 // pred_check_branch
          %249 = sbr.rel (%p247) target = $region40
        $region39: #{tpu_custom_call.1} parent=35 // pred_region
          %250 = dma.done %s243, 64
        $region40: #{tpu_custom_call.1} parent=35 // pred_fallthru
          _
        // Predicated region
        $region41: #{tpu_custom_call.1} parent=35 // pred_check
          %p251 = pneg %p81
        $region42: #{tpu_custom_call.1} parent=35 // pred_check_branch
          %253 = sbr.rel (%p251) target = $region44
        $region43: #{tpu_custom_call.1} parent=35 // pred_region
          %254 = dma.done [#allocation8], 128
        $region44: #{tpu_custom_call.1} parent=35 // pred_fallthru
          _
        %s255 = sand.u32 %s47, 1
        %s256 = scalar_lea.sflag [#allocation5], %s255
        %s257 = sand.u32 %s47, 1
        %s258 = smul.addr %s257, 4
        %s259 = scalar_lea.vmem [#allocation4], %s258
        %p260 = pneg %p60
        %p261 = pneg %p57
        %p262 = pneg %p81
        %p263 = pneg %p78
        %p264 = pneg %p102
        %p265 = pneg %p99
        %p266 = pneg %p123
        %p267 = pneg %p120
        %p268 = pneg %p151
        %p269 = pneg %p148
        %s270 = sand.u32 %s138, 1
        %s271 = scalar_lea.sflag [#allocation6], %s270
        %s272 = sand.u32 %s138, 1
        %s273 = smul.addr %s272, 8
        %s274 = scalar_lea.vmem [#allocation9], %s273
        %p275 = pneg %p179
        %p276 = pneg %p176
        %s277 = sand.u32 %s166, 1
        %s278 = scalar_lea.sflag [#allocation11], %s277
        %s279 = sand.u32 %s166, 1
        %s280 = smul.addr %s279, 32
        %s281 = scalar_lea.vmem [#allocation10], %s280
        %p283 = scmp.eq.s32.totalorder %s32, 0
        // Predicated region
        $region45: #{tpu_custom_call.1} parent=35 // pred_check
          %p284 = pneg %p283
        $region46: #{tpu_custom_call.1} parent=35 // pred_check_branch
          %286 = sbr.rel (%p284) target = $region48
        $region47: #{tpu_custom_call.1} parent=35 // pred_region
          %v287 = vld [vmem:[%s246] sm:$0xf]
          %v288 = vld [vmem:[#allocation7] sm:$0xf]
          %v289 = vld [vmem:[#allocation7 + $0x4] sm:$0xf]
          %v292 = vunpack.c.l.b16 %v288
          %v293 = vunpack.c.l.b16 %v289
          %v294 = vpack.c.b16 %v293, %v292
          %vm296 = vcmask 130048
          %v298 = vsel %vm296, %v287, 0
          %300 = vmatprep.subr.bf16.mxu0 0
          %301 = vmatpush1.bf16.msra.mxu0 %v294
          %302 = vmatprep.subr.bf16.mxu0 0
          %303 = vmatpush1.bf16.msra.mxu0 0
          %304 = vmatprep.subr.bf16.mxu0 0
          %305 = vmatpush1.bf16.msra.mxu0 0
          %306 = vmatprep.subr.bf16.mxu0 0
          %307 = vmatpush1.bf16.msra.mxu0 0
          %308 = vmatprep.subr.bf16.mxu0 0
          %309 = vmatpush1.bf16.msra.mxu0 0
          %310 = vmatprep.subr.bf16.mxu0 0
          %311 = vmatpush1.bf16.msra.mxu0 0
          %312 = vmatprep.subr.bf16.mxu0 0
          %313 = vmatpush1.bf16.msra.mxu0 0
          %314 = vmatprep.subr.bf16.mxu0 0
          %315 = vmatpush1.bf16.msra.mxu0 0
          %316 = vmatprep.subr.bf16.mxu0 0
          %317 = vmatpush1.bf16.msra.mxu0 0
          %318 = vmatprep.subr.bf16.mxu0 0
          %319 = vmatpush1.bf16.msra.mxu0 0
          %320 = vmatprep.subr.bf16.mxu0 0
          %321 = vmatpush1.bf16.msra.mxu0 0
          %322 = vmatprep.subr.bf16.mxu0 0
          %323 = vmatpush1.bf16.msra.mxu0 0
          %324 = vmatprep.subr.bf16.mxu0 0
          %325 = vmatpush1.bf16.msra.mxu0 0
          %326 = vmatprep.subr.bf16.mxu0 0
          %327 = vmatpush1.bf16.msra.mxu0 0
          %328 = vmatprep.subr.bf16.mxu0 0
          %329 = vmatpush1.bf16.msra.mxu0 0
          %330 = vmatprep.subr.bf16.mxu0 0
          %331 = vmatpush1.bf16.msra.mxu0 0
          %332 = vmatprep.mubr.bf16.mxu0 0
          %333 = vmatmul.mubr.bf16.gmra.mrb[0].mxu0 %v298
          %v334 = vpop.f32.mrb[0].mxu0
          %v335 = vadd.f32 0.0, %v334
          %v336 = vpop.f32.mrb[0].mxu0
          %v337 = vpop.f32.mrb[0].mxu0
          %v338 = vpop.f32.mrb[0].mxu0
          %339 = vdwg.mxu0
          %v340 = vpack.c.bf16 %v335, %v335
          %341 = vst [vmem:[#allocation2] sm:$0xf] %v340
          %v342 = vunpack.c.l.bf16 %v340
          %v343 = vld [vmem:[%s2 + $0x1] sm:$0x1]
          %v344 = vlaneseq
          %v345 = vshrl.u32 %v344, 7
          %v346 = vsub.s32 0, %v345
          %v347 = vrot.slane %v343, %v346
          %v348 = vmul.f32 %v342, %v347
          %vm349 = vcmask 261120
          %v350 = vsel %vm349, %v348, 0.0
          %351 = vadd.xlane.f32.xlu0 %v350
          %v352 = vpop.xlane.xlu0 %351
          %353 = vxpose.xlu0.b32.start [1/16] %v352, 128
          %354 = vxpose.xlu0.b32.cont [2/16] 0.0, 128
          %355 = vxpose.xlu0.b32.cont [3/16] 0.0, 128
          %356 = vxpose.xlu0.b32.cont [4/16] 0.0, 128
          %357 = vxpose.xlu0.b32.cont [5/16] 0.0, 128
          %358 = vxpose.xlu0.b32.cont [6/16] 0.0, 128
          %359 = vxpose.xlu0.b32.cont [7/16] 0.0, 128
          %360 = vxpose.xlu0.b32.cont [8/16] 0.0, 128
          %361 = vxpose.xlu0.b32.cont [9/16] 0.0, 128
          %362 = vxpose.xlu0.b32.cont [10/16] 0.0, 128
          %363 = vxpose.xlu0.b32.cont [11/16] 0.0, 128
          %364 = vxpose.xlu0.b32.cont [12/16] 0.0, 128
          %365 = vxpose.xlu0.b32.cont [13/16] 0.0, 128
          %366 = vxpose.xlu0.b32.cont [14/16] 0.0, 128
          %367 = vxpose.xlu0.b32.cont [15/16] 0.0, 128
          %368 = vxpose.xlu0.b32.end [16/16] 0.0, 128
          %v369 = vpop.trf.xlu0
          %v370 = vpop.trf.xlu0
          %v371 = vpop.trf.xlu0
          %v372 = vpop.trf.xlu0
          %v373 = vpop.trf.xlu0
          %v374 = vpop.trf.xlu0
          %v375 = vpop.trf.xlu0
          %v376 = vpop.trf.xlu0
          %v377 = vpop.trf.xlu0
          %v378 = vpop.trf.xlu0
          %v379 = vpop.trf.xlu0
          %v380 = vpop.trf.xlu0
          %v381 = vpop.trf.xlu0
          %v382 = vpop.trf.xlu0
          %v383 = vpop.trf.xlu0
          %v384 = vpop.trf.xlu0
          %vm385 = vcmask 57344
          %386 = vst.msk [vmem:[#allocation3] sm:$0x1] %vm385, %v369
          %v387 = vld [vmem:[%s2 + $0x1] sm:$0x1]
          %v388 = vlaneseq
          %v389 = vshrl.u32 %v388, 7
          %v390 = vsub.s32 0, %v389
          %v391 = vrot.slane %v387, %v390
          %v392 = vmul.f32 %v342, %v391
          %394 = vrot.lane.b32.xlu0 %v392, 96
          %v395 = vpop.permute.xlu0 %394
          %v397 = vsel %vm349, %v395, 0.0
          %398 = vadd.xlane.f32.xlu0 %v397
          %v399 = vpop.xlane.xlu0 %398
          %400 = vxpose.xlu0.b32.start [1/16] %v399, 128
          %401 = vxpose.xlu0.b32.cont [2/16] 0.0, 128
          %402 = vxpose.xlu0.b32.cont [3/16] 0.0, 128
          %403 = vxpose.xlu0.b32.cont [4/16] 0.0, 128
          %404 = vxpose.xlu0.b32.cont [5/16] 0.0, 128
          %405 = vxpose.xlu0.b32.cont [6/16] 0.0, 128
          %406 = vxpose.xlu0.b32.cont [7/16] 0.0, 128
          %407 = vxpose.xlu0.b32.cont [8/16] 0.0, 128
          %408 = vxpose.xlu0.b32.cont [9/16] 0.0, 128
          %409 = vxpose.xlu0.b32.cont [10/16] 0.0, 128
          %410 = vxpose.xlu0.b32.cont [11/16] 0.0, 128
          %411 = vxpose.xlu0.b32.cont [12/16] 0.0, 128
          %412 = vxpose.xlu0.b32.cont [13/16] 0.0, 128
          %413 = vxpose.xlu0.b32.cont [14/16] 0.0, 128
          %414 = vxpose.xlu0.b32.cont [15/16] 0.0, 128
          %415 = vxpose.xlu0.b32.end [16/16] 0.0, 128
          %v416 = vpop.trf.xlu0
          %v417 = vpop.trf.xlu0
          %v418 = vpop.trf.xlu0
          %v419 = vpop.trf.xlu0
          %v420 = vpop.trf.xlu0
          %v421 = vpop.trf.xlu0
          %v422 = vpop.trf.xlu0
          %v423 = vpop.trf.xlu0
          %v424 = vpop.trf.xlu0
          %v425 = vpop.trf.xlu0
          %v426 = vpop.trf.xlu0
          %v427 = vpop.trf.xlu0
          %v428 = vpop.trf.xlu0
          %v429 = vpop.trf.xlu0
          %v430 = vpop.trf.xlu0
          %v431 = vpop.trf.xlu0
          %432 = vst.msk [vmem:[#allocation3 + $0x1] sm:$0x1] %vm385, %v416
          %v433 = vld [vmem:[%s2 + $0x1] sm:$0x1]
          %v434 = vlaneseq
          %v435 = vshrl.u32 %v434, 7
          %v436 = vsub.s32 0, %v435
          %v437 = vrot.slane %v433, %v436
          %v438 = vmul.f32 %v342, %v437
          %440 = vrot.lane.b32.xlu0 %v438, 64
          %v441 = vpop.permute.xlu0 %440
          %v443 = vsel %vm349, %v441, 0.0
          %444 = vadd.xlane.f32.xlu0 %v443
          %v445 = vpop.xlane.xlu0 %444
          %446 = vxpose.xlu0.b32.start [1/16] %v445, 128
          %447 = vxpose.xlu0.b32.cont [2/16] 0.0, 128
          %448 = vxpose.xlu0.b32.cont [3/16] 0.0, 128
          %449 = vxpose.xlu0.b32.cont [4/16] 0.0, 128
          %450 = vxpose.xlu0.b32.cont [5/16] 0.0, 128
          %451 = vxpose.xlu0.b32.cont [6/16] 0.0, 128
          %452 = vxpose.xlu0.b32.cont [7/16] 0.0, 128
          %453 = vxpose.xlu0.b32.cont [8/16] 0.0, 128
          %454 = vxpose.xlu0.b32.cont [9/16] 0.0, 128
          %455 = vxpose.xlu0.b32.cont [10/16] 0.0, 128
          %456 = vxpose.xlu0.b32.cont [11/16] 0.0, 128
          %457 = vxpose.xlu0.b32.cont [12/16] 0.0, 128
          %458 = vxpose.xlu0.b32.cont [13/16] 0.0, 128
          %459 = vxpose.xlu0.b32.cont [14/16] 0.0, 128
          %460 = vxpose.xlu0.b32.cont [15/16] 0.0, 128
          %461 = vxpose.xlu0.b32.end [16/16] 0.0, 128
          %v462 = vpop.trf.xlu0
          %v463 = vpop.trf.xlu0
          %v464 = vpop.trf.xlu0
          %v465 = vpop.trf.xlu0
          %v466 = vpop.trf.xlu0
          %v467 = vpop.trf.xlu0
          %v468 = vpop.trf.xlu0
          %v469 = vpop.trf.xlu0
          %v470 = vpop.trf.xlu0
          %v471 = vpop.trf.xlu0
          %v472 = vpop.trf.xlu0
          %v473 = vpop.trf.xlu0
          %v474 = vpop.trf.xlu0
          %v475 = vpop.trf.xlu0
          %v476 = vpop.trf.xlu0
          %v477 = vpop.trf.xlu0
          %478 = vst.msk [vmem:[#allocation3 + $0x2] sm:$0x1] %vm385, %v462
          %v479 = vld [vmem:[%s2 + $0x1] sm:$0x1]
          %v480 = vlaneseq
          %v481 = vshrl.u32 %v480, 7
          %v482 = vsub.s32 0, %v481
          %v483 = vrot.slane %v479, %v482
          %v484 = vmul.f32 %v342, %v483
          %486 = vrot.lane.b32.xlu0 %v484, 32
          %v487 = vpop.permute.xlu0 %486
          %v489 = vsel %vm349, %v487, 0.0
          %490 = vadd.xlane.f32.xlu0 %v489
          %v491 = vpop.xlane.xlu0 %490
          %492 = vxpose.xlu0.b32.start [1/16] %v491, 128
          %493 = vxpose.xlu0.b32.cont [2/16] 0.0, 128
          %494 = vxpose.xlu0.b32.cont [3/16] 0.0, 128
          %495 = vxpose.xlu0.b32.cont [4/16] 0.0, 128
          %496 = vxpose.xlu0.b32.cont [5/16] 0.0, 128
          %497 = vxpose.xlu0.b32.cont [6/16] 0.0, 128
          %498 = vxpose.xlu0.b32.cont [7/16] 0.0, 128
          %499 = vxpose.xlu0.b32.cont [8/16] 0.0, 128
          %500 = vxpose.xlu0.b32.cont [9/16] 0.0, 128
          %501 = vxpose.xlu0.b32.cont [10/16] 0.0, 128
          %502 = vxpose.xlu0.b32.cont [11/16] 0.0, 128
          %503 = vxpose.xlu0.b32.cont [12/16] 0.0, 128
          %504 = vxpose.xlu0.b32.cont [13/16] 0.0, 128
          %505 = vxpose.xlu0.b32.cont [14/16] 0.0, 128
          %506 = vxpose.xlu0.b32.cont [15/16] 0.0, 128
          %507 = vxpose.xlu0.b32.end [16/16] 0.0, 128
          %v508 = vpop.trf.xlu0
          %v509 = vpop.trf.xlu0
          %v510 = vpop.trf.xlu0
          %v511 = vpop.trf.xlu0
          %v512 = vpop.trf.xlu0
          %v513 = vpop.trf.xlu0
          %v514 = vpop.trf.xlu0
          %v515 = vpop.trf.xlu0
          %v516 = vpop.trf.xlu0
          %v517 = vpop.trf.xlu0
          %v518 = vpop.trf.xlu0
          %v519 = vpop.trf.xlu0
          %v520 = vpop.trf.xlu0
          %v521 = vpop.trf.xlu0
          %v522 = vpop.trf.xlu0
          %v523 = vpop.trf.xlu0
          %524 = vst.msk [vmem:[#allocation3 + $0x3] sm:$0x1] %vm385, %v508
        $region48: #{tpu_custom_call.1} parent=35 // pred_fallthru
          _
        %s525 = smul.u32 %s32, 8
        %s526 = sshra.s32 %s525, 3
        %s527 = sand.u32 %s525, 7
        %s528 = smul.addr %s526, 4
        %s529 = scalar_lea.vmem [#allocation2], %s528
        %v530 = vld [vmem:[%s529] sm:$0xf]
        %v531 = vunpack.c.l.bf16 %v530
        %v532 = vld [vmem:[%s2] sm:$0x1]
        %v533 = vlaneseq
        %v534 = vshrl.u32 %v533, 7
        %v535 = vsub.s32 0, %v534
        %v536 = vrot.slane %v532, %v535
        %v537 = vmul.f32 %v531, %v536
        %vm538 = vcmask 261120
        %v539 = vsel %vm538, %v537, 0.0
        %540 = vadd.xlane.f32.xlu0 %v539
        %v541 = vpop.xlane.xlu0 %540
        %v542 = vld [vmem:[#allocation3] sm:$0x1]
        %v543 = vlaneseq
        %v544 = vshrl.u32 %v543, 7
        %v545 = vsub.s32 0, %v544
        %v546 = vrot.slane %v542, %v545
        %v547 = vadd.f32 %v541, %v546
        %vm548 = vcmp.ge.f32.partialorder %v547, 0.0
        %v549 = vmul.f32 %v547, 0.2
        %v550 = vsel %vm548, %v547, %v549
        %vm551 = vcmask 64512
        %v552 = vsel %vm551, %v550, -inf
        %553 = vmax.xlane.f32.xlu0 %v552
        %v554 = vpop.xlane.xlu0 %553
        %v555 = vsub.f32 %v550, %v554
        %v556 = vmul.f32 %v555, 1.442695
        %v557 = vpow.pop %v556
        %v558 = vsel %vm551, %v557, 0.0
        %559 = vadd.xlane.f32.xlu0 %v558
        %v560 = vpop.xlane.xlu0 %559
        %v561 = vrcp.pop %v560
        %v562 = vmul.f32 %v557, %v561
        %563 = vst.msk [vmem:[%s281] sm:$0xff] %vm551, %v562
        %v564 = vpack.c.bf16 %v562, %v562
        %v565 = vld [vmem:[#allocation2] sm:$0xf]
        %v567 = vsel %vm551, %v564, 0
        %vm569 = vcmask 1043456
        %v571 = vsel %vm569, %v565, 0
        %573 = vmatprep.subr.bf16.mxu0 0
        %574 = vmatpush1.bf16.msra.mxu0 %v571
        %575 = vmatprep.subr.bf16.mxu0 0
        %576 = vmatpush1.bf16.msra.mxu0 0
        %577 = vmatprep.subr.bf16.mxu0 0
        %578 = vmatpush1.bf16.msra.mxu0 0
        %579 = vmatprep.subr.bf16.mxu0 0
        %580 = vmatpush1.bf16.msra.mxu0 0
        %581 = vmatprep.subr.bf16.mxu0 0
        %582 = vmatpush1.bf16.msra.mxu0 0
        %583 = vmatprep.subr.bf16.mxu0 0
        %584 = vmatpush1.bf16.msra.mxu0 0
        %585 = vmatprep.subr.bf16.mxu0 0
        %586 = vmatpush1.bf16.msra.mxu0 0
        %587 = vmatprep.subr.bf16.mxu0 0
        %588 = vmatpush1.bf16.msra.mxu0 0
        %589 = vmatprep.subr.bf16.mxu0 0
        %590 = vmatpush1.bf16.msra.mxu0 0
        %591 = vmatprep.subr.bf16.mxu0 0
        %592 = vmatpush1.bf16.msra.mxu0 0
        %593 = vmatprep.subr.bf16.mxu0 0
        %594 = vmatpush1.bf16.msra.mxu0 0
        %595 = vmatprep.subr.bf16.mxu0 0
        %596 = vmatpush1.bf16.msra.mxu0 0
        %597 = vmatprep.subr.bf16.mxu0 0
        %598 = vmatpush1.bf16.msra.mxu0 0
        %599 = vmatprep.subr.bf16.mxu0 0
        %600 = vmatpush1.bf16.msra.mxu0 0
        %601 = vmatprep.subr.bf16.mxu0 0
        %602 = vmatpush1.bf16.msra.mxu0 0
        %603 = vmatprep.subr.bf16.mxu0 0
        %604 = vmatpush1.bf16.msra.mxu0 0
        %605 = vmatprep.mubr.bf16.mxu0 0
        %606 = vmatmul.mubr.bf16.gmra.mrb[0].mxu0 %v567
        %v607 = vpop.f32.mrb[0].mxu0
        %v608 = vadd.f32 0.0, %v607
        %v609 = vpop.f32.mrb[0].mxu0
        %v610 = vpop.f32.mrb[0].mxu0
        %v611 = vpop.f32.mrb[0].mxu0
        %612 = vdwg.mxu0
        %v613 = vld [vmem:[%s2] sm:$0x1]
        %v614 = vlaneseq
        %v615 = vshrl.u32 %v614, 7
        %v616 = vsub.s32 0, %v615
        %v617 = vrot.slane %v613, %v616
        %v618 = vmul.f32 %v531, %v617
        %620 = vrot.lane.b32.xlu0 %v618, 96
        %v621 = vpop.permute.xlu0 %620
        %v623 = vsel %vm538, %v621, 0.0
        %624 = vadd.xlane.f32.xlu0 %v623
        %v625 = vpop.xlane.xlu0 %624
        %v626 = vld [vmem:[#allocation3 + $0x1] sm:$0x1]
        %v627 = vlaneseq
        %v628 = vshrl.u32 %v627, 7
        %v629 = vsub.s32 0, %v628
        %v630 = vrot.slane %v626, %v629
        %v631 = vadd.f32 %v625, %v630
        %vm632 = vcmp.ge.f32.partialorder %v631, 0.0
        %v633 = vmul.f32 %v631, 0.2
        %v634 = vsel %vm632, %v631, %v633
        %v635 = vsel %vm551, %v634, -inf
        %636 = vmax.xlane.f32.xlu0 %v635
        %v637 = vpop.xlane.xlu0 %636
        %v638 = vsub.f32 %v634, %v637
        %v639 = vmul.f32 %v638, 1.442695
        %v640 = vpow.pop %v639
        %v641 = vsel %vm551, %v640, 0.0
        %642 = vadd.xlane.f32.xlu0 %v641
        %v643 = vpop.xlane.xlu0 %642
        %v644 = vrcp.pop %v643
        %v645 = vmul.f32 %v640, %v644
        %s646 = scalar_lea.vmem %s281, 8 [#allocation10]
        %647 = vst.msk [vmem:[%s646] sm:$0xff] %vm551, %v645
        %v648 = vpack.c.bf16 %v645, %v645
        %v649 = vld [vmem:[#allocation2] sm:$0xf]
        %v651 = vunpack.c.l.b16 %v649
        %v652 = vpack.c.b16 %v651, %v651
        %653 = vrot.lane.b32.xlu0 %v652, 96
        %v654 = vpop.permute.xlu0 %653
        %v656 = vsel %vm551, %v648, 0
        %v659 = vsel %vm569, %v654, 0
        %661 = vmatprep.subr.bf16.mxu0 0
        %662 = vmatpush1.bf16.msra.mxu0 %v659
        %663 = vmatprep.subr.bf16.mxu0 0
        %664 = vmatpush1.bf16.msra.mxu0 0
        %665 = vmatprep.subr.bf16.mxu0 0
        %666 = vmatpush1.bf16.msra.mxu0 0
        %667 = vmatprep.subr.bf16.mxu0 0
        %668 = vmatpush1.bf16.msra.mxu0 0
        %669 = vmatprep.subr.bf16.mxu0 0
        %670 = vmatpush1.bf16.msra.mxu0 0
        %671 = vmatprep.subr.bf16.mxu0 0
        %672 = vmatpush1.bf16.msra.mxu0 0
        %673 = vmatprep.subr.bf16.mxu0 0
        %674 = vmatpush1.bf16.msra.mxu0 0
        %675 = vmatprep.subr.bf16.mxu0 0
        %676 = vmatpush1.bf16.msra.mxu0 0
        %677 = vmatprep.subr.bf16.mxu0 0
        %678 = vmatpush1.bf16.msra.mxu0 0
        %679 = vmatprep.subr.bf16.mxu0 0
        %680 = vmatpush1.bf16.msra.mxu0 0
        %681 = vmatprep.subr.bf16.mxu0 0
        %682 = vmatpush1.bf16.msra.mxu0 0
        %683 = vmatprep.subr.bf16.mxu0 0
        %684 = vmatpush1.bf16.msra.mxu0 0
        %685 = vmatprep.subr.bf16.mxu0 0
        %686 = vmatpush1.bf16.msra.mxu0 0
        %687 = vmatprep.subr.bf16.mxu0 0
        %688 = vmatpush1.bf16.msra.mxu0 0
        %689 = vmatprep.subr.bf16.mxu0 0
        %690 = vmatpush1.bf16.msra.mxu0 0
        %691 = vmatprep.subr.bf16.mxu0 0
        %692 = vmatpush1.bf16.msra.mxu0 0
        %693 = vmatprep.mubr.bf16.mxu0 0
        %694 = vmatmul.mubr.bf16.gmra.mrb[0].mxu0 %v656
        %v695 = vpop.f32.mrb[0].mxu0
        %v696 = vadd.f32 0.0, %v695
        %v697 = vpop.f32.mrb[0].mxu0
        %v698 = vpop.f32.mrb[0].mxu0
        %v699 = vpop.f32.mrb[0].mxu0
        %700 = vdwg.mxu0
        %v701 = vld [vmem:[%s2] sm:$0x1]
        %v702 = vlaneseq
        %v703 = vshrl.u32 %v702, 7
        %v704 = vsub.s32 0, %v703
        %v705 = vrot.slane %v701, %v704
        %v706 = vmul.f32 %v531, %v705
        %708 = vrot.lane.b32.xlu0 %v706, 64
        %v709 = vpop.permute.xlu0 %708
        %v711 = vsel %vm538, %v709, 0.0
        %712 = vadd.xlane.f32.xlu0 %v711
        %v713 = vpop.xlane.xlu0 %712
        %v714 = vld [vmem:[#allocation3 + $0x2] sm:$0x1]
        %v715 = vlaneseq
        %v716 = vshrl.u32 %v715, 7
        %v717 = vsub.s32 0, %v716
        %v718 = vrot.slane %v714, %v717
        %v719 = vadd.f32 %v713, %v718
        %vm720 = vcmp.ge.f32.partialorder %v719, 0.0
        %v721 = vmul.f32 %v719, 0.2
        %v722 = vsel %vm720, %v719, %v721
        %v723 = vsel %vm551, %v722, -inf
        %724 = vmax.xlane.f32.xlu0 %v723
        %v725 = vpop.xlane.xlu0 %724
        %v726 = vsub.f32 %v722, %v725
        %v727 = vmul.f32 %v726, 1.442695
        %v728 = vpow.pop %v727
        %v729 = vsel %vm551, %v728, 0.0
        %730 = vadd.xlane.f32.xlu0 %v729
        %v731 = vpop.xlane.xlu0 %730
        %v732 = vrcp.pop %v731
        %v733 = vmul.f32 %v728, %v732
        %s734 = scalar_lea.vmem %s281, 16 [#allocation10]
        %735 = vst.msk [vmem:[%s734] sm:$0xff] %vm551, %v733
        %v736 = vpack.c.bf16 %v733, %v733
        %v737 = vld [vmem:[#allocation2] sm:$0xf]
        %v739 = vunpack.c.l.b16 %v737
        %v740 = vpack.c.b16 %v739, %v739
        %741 = vrot.lane.b32.xlu0 %v740, 64
        %v742 = vpop.permute.xlu0 %741
        %v744 = vsel %vm551, %v736, 0
        %v747 = vsel %vm569, %v742, 0
        %749 = vmatprep.subr.bf16.mxu0 0
        %750 = vmatpush1.bf16.msra.mxu0 %v747
        %751 = vmatprep.subr.bf16.mxu0 0
        %752 = vmatpush1.bf16.msra.mxu0 0
        %753 = vmatprep.subr.bf16.mxu0 0
        %754 = vmatpush1.bf16.msra.mxu0 0
        %755 = vmatprep.subr.bf16.mxu0 0
        %756 = vmatpush1.bf16.msra.mxu0 0
        %757 = vmatprep.subr.bf16.mxu0 0
        %758 = vmatpush1.bf16.msra.mxu0 0
        %759 = vmatprep.subr.bf16.mxu0 0
        %760 = vmatpush1.bf16.msra.mxu0 0
        %761 = vmatprep.subr.bf16.mxu0 0
        %762 = vmatpush1.bf16.msra.mxu0 0
        %763 = vmatprep.subr.bf16.mxu0 0
        %764 = vmatpush1.bf16.msra.mxu0 0
        %765 = vmatprep.subr.bf16.mxu0 0
        %766 = vmatpush1.bf16.msra.mxu0 0
        %767 = vmatprep.subr.bf16.mxu0 0
        %768 = vmatpush1.bf16.msra.mxu0 0
        %769 = vmatprep.subr.bf16.mxu0 0
        %770 = vmatpush1.bf16.msra.mxu0 0
        %771 = vmatprep.subr.bf16.mxu0 0
        %772 = vmatpush1.bf16.msra.mxu0 0
        %773 = vmatprep.subr.bf16.mxu0 0
        %774 = vmatpush1.bf16.msra.mxu0 0
        %775 = vmatprep.subr.bf16.mxu0 0
        %776 = vmatpush1.bf16.msra.mxu0 0
        %777 = vmatprep.subr.bf16.mxu0 0
        %778 = vmatpush1.bf16.msra.mxu0 0
        %779 = vmatprep.subr.bf16.mxu0 0
        %780 = vmatpush1.bf16.msra.mxu0 0
        %781 = vmatprep.mubr.bf16.mxu0 0
        %782 = vmatmul.mubr.bf16.gmra.mrb[0].mxu0 %v744
        %v783 = vpop.f32.mrb[0].mxu0
        %v784 = vadd.f32 0.0, %v783
        %v785 = vpop.f32.mrb[0].mxu0
        %v786 = vpop.f32.mrb[0].mxu0
        %v787 = vpop.f32.mrb[0].mxu0
        %788 = vdwg.mxu0
        %v789 = vld [vmem:[%s2] sm:$0x1]
        %v790 = vlaneseq
        %v791 = vshrl.u32 %v790, 7
        %v792 = vsub.s32 0, %v791
        %v793 = vrot.slane %v789, %v792
        %v794 = vmul.f32 %v531, %v793
        %796 = vrot.lane.b32.xlu0 %v794, 32
        %v797 = vpop.permute.xlu0 %796
        %v799 = vsel %vm538, %v797, 0.0
        %800 = vadd.xlane.f32.xlu0 %v799
        %v801 = vpop.xlane.xlu0 %800
        %v802 = vld [vmem:[#allocation3 + $0x3] sm:$0x1]
        %v803 = vlaneseq
        %v804 = vshrl.u32 %v803, 7
        %v805 = vsub.s32 0, %v804
        %v806 = vrot.slane %v802, %v805
        %v807 = vadd.f32 %v801, %v806
        %vm808 = vcmp.ge.f32.partialorder %v807, 0.0
        %v809 = vmul.f32 %v807, 0.2
        %v810 = vsel %vm808, %v807, %v809
        %v811 = vsel %vm551, %v810, -inf
        %812 = vmax.xlane.f32.xlu0 %v811
        %v813 = vpop.xlane.xlu0 %812
        %v814 = vsub.f32 %v810, %v813
        %v815 = vmul.f32 %v814, 1.442695
        %v816 = vpow.pop %v815
        %v817 = vsel %vm551, %v816, 0.0
        %818 = vadd.xlane.f32.xlu0 %v817
        %v819 = vpop.xlane.xlu0 %818
        %v820 = vrcp.pop %v819
        %v821 = vmul.f32 %v816, %v820
        %s822 = scalar_lea.vmem %s281, 24 [#allocation10]
        %823 = vst.msk [vmem:[%s822] sm:$0xff] %vm551, %v821
        %v824 = vpack.c.bf16 %v821, %v821
        %v825 = vld [vmem:[#allocation2] sm:$0xf]
        %v827 = vunpack.c.l.b16 %v825
        %v828 = vpack.c.b16 %v827, %v827
        %829 = vrot.lane.b32.xlu0 %v828, 32
        %v830 = vpop.permute.xlu0 %829
        %v832 = vsel %vm551, %v824, 0
        %v835 = vsel %vm569, %v830, 0
        %837 = vmatprep.subr.bf16.mxu0 0
        %838 = vmatpush1.bf16.msra.mxu0 %v835
        %839 = vmatprep.subr.bf16.mxu0 0
        %840 = vmatpush1.bf16.msra.mxu0 0
        %841 = vmatprep.subr.bf16.mxu0 0
        %842 = vmatpush1.bf16.msra.mxu0 0
        %843 = vmatprep.subr.bf16.mxu0 0
        %844 = vmatpush1.bf16.msra.mxu0 0
        %845 = vmatprep.subr.bf16.mxu0 0
        %846 = vmatpush1.bf16.msra.mxu0 0
        %847 = vmatprep.subr.bf16.mxu0 0
        %848 = vmatpush1.bf16.msra.mxu0 0
        %849 = vmatprep.subr.bf16.mxu0 0
        %850 = vmatpush1.bf16.msra.mxu0 0
        %851 = vmatprep.subr.bf16.mxu0 0
        %852 = vmatpush1.bf16.msra.mxu0 0
        %853 = vmatprep.subr.bf16.mxu0 0
        %854 = vmatpush1.bf16.msra.mxu0 0
        %855 = vmatprep.subr.bf16.mxu0 0
        %856 = vmatpush1.bf16.msra.mxu0 0
        %857 = vmatprep.subr.bf16.mxu0 0
        %858 = vmatpush1.bf16.msra.mxu0 0
        %859 = vmatprep.subr.bf16.mxu0 0
        %860 = vmatpush1.bf16.msra.mxu0 0
        %861 = vmatprep.subr.bf16.mxu0 0
        %862 = vmatpush1.bf16.msra.mxu0 0
        %863 = vmatprep.subr.bf16.mxu0 0
        %864 = vmatpush1.bf16.msra.mxu0 0
        %865 = vmatprep.subr.bf16.mxu0 0
        %866 = vmatpush1.bf16.msra.mxu0 0
        %867 = vmatprep.subr.bf16.mxu0 0
        %868 = vmatpush1.bf16.msra.mxu0 0
        %869 = vmatprep.mubr.bf16.mxu0 0
        %870 = vmatmul.mubr.bf16.gmra.mrb[0].mxu0 %v832
        %v871 = vpop.f32.mrb[0].mxu0
        %v872 = vadd.f32 0.0, %v871
        %v873 = vpop.f32.mrb[0].mxu0
        %v874 = vpop.f32.mrb[0].mxu0
        %v875 = vpop.f32.mrb[0].mxu0
        %876 = vdwg.mxu0
        %878 = vrot.lane.b32.xlu0 %v696, 32
        %v879 = vpop.permute.xlu0 %878
        %882 = vrot.lane.b32.xlu0 %v784, 64
        %v883 = vpop.permute.xlu0 %882
        %886 = vrot.lane.b32.xlu0 %v872, 96
        %v887 = vpop.permute.xlu0 %886
        %v889 = vsel %vm538, %v608, %v879
        %vm890 = vcmask 523264
        %v891 = vsel %vm890, %v889, %v883
        %vm892 = vcmask 785408
        %v893 = vsel %vm892, %v891, %v887
        %v894 = vld [vmem:[%s3] sm:$0x1]
        %v896 = vlaneseq
        %v897 = vshrl.u32 %v896, 7
        %v898 = vsub.s32 0, %v897
        %v899 = vrot.slane %v894, %v898
        %v901 = vadd.f32 %v893, %v899
        %902 = vst [vmem:[%s274] sm:$0xff] %v901
        %s903 = sand.u32 %s138, 1
        %s904 = scalar_lea.sflag [#allocation6], %s903
        %s905 = sand.u32 %s138, 1
        %s906 = smul.addr %s905, 8
        %s907 = scalar_lea.vmem [#allocation9], %s906
        %s908 = sand.u32 %s166, 1
        %s909 = scalar_lea.sflag [#allocation11], %s908
        %s910 = sand.u32 %s166, 1
        %s911 = smul.addr %s910, 32
        %s912 = scalar_lea.vmem [#allocation10], %s911
        // Predicated region
        $region49: #{tpu_custom_call.1} parent=35 // pred_check
          %p913 = pneg %p148
        $region50: #{tpu_custom_call.1} parent=35 // pred_check_branch
          %915 = sbr.rel (%p913) target = $region52
        $region51: #{tpu_custom_call.1} parent=35 // pred_region
          %s917 = ssub.s32 128, 128
          %918 = vsyncadd %s904, %s917
          %s919 = sadd.s32 %s32, %s31
          %s920 = smul.addr %s919, 128
          %s921 = scalar_lea.hbm %s4, %s920
          %s923 = sshll.u32 %s907, 4
          %s924 = int_to_ptr.vmem [resolvable:$true] %s923
          %926 = dma.vmem_to_hbm [thread:$0]  %s924, 128, %s921, %s904
        $region52: #{tpu_custom_call.1} parent=35 // pred_fallthru
          _
        // Predicated region
        $region53: #{tpu_custom_call.1} parent=35 // pred_check
          %p927 = pneg %p176
        $region54: #{tpu_custom_call.1} parent=35 // pred_check_branch
          %929 = sbr.rel (%p927) target = $region56
        $region55: #{tpu_custom_call.1} parent=35 // pred_region
          %s931 = ssub.s32 512, 512
          %932 = vsyncadd %s909, %s931
          %s933 = smul.addr %s31, 4
          %s934 = sadd.s32 %s32, %s933
          %s935 = smul.addr %s934, 128
          %s936 = scalar_lea.hbm %s5, %s935
          %s937 = sshll.u32 %s912, 4
          %s938 = int_to_ptr.vmem [resolvable:$true] %s937
          %943 = dma.vmem_to_hbm [thread:$0]  %s938, 512, %s936, %s909, 128, 128, 8
        $region56: #{tpu_custom_call.1} parent=35 // pred_fallthru
          _
      $region36: #{tpu_custom_call.1} parent=5 // pred_fallthru
        _
      %p944 = scmp.le.s32.totalorder 2, %s22
      // Predicated region
      $region57: #{tpu_custom_call.1} parent=5 // pred_check
        %p945 = pneg %p944
      $region58: #{tpu_custom_call.1} parent=5 // pred_check_branch
        %947 = sbr.rel (%p945) target = $region60
      $region59: #{tpu_custom_call.1} parent=5 // pred_region
        %s948 = ssub.s32 %s22, 2
        // Predicated region
        $region61: #{tpu_custom_call.1} parent=59 // pred_check
          %p949 = pneg %p154
        $region62: #{tpu_custom_call.1} parent=59 // pred_check_branch
          %951 = sbr.rel (%p949) target = $region64
        $region63: #{tpu_custom_call.1} parent=59 // pred_region
          %s952 = sand.u32 %s139, 1
          %s953 = scalar_lea.sflag [#allocation6], %s952
          %s954 = sand.u32 %s139, 1
          %s955 = smul.addr %s954, 8
          %s956 = scalar_lea.vmem [#allocation9], %s955
          %957 = dma.done %s953, 128
        $region64: #{tpu_custom_call.1} parent=59 // pred_fallthru
          _
        // Predicated region
        $region65: #{tpu_custom_call.1} parent=59 // pred_check
          %p958 = pneg %p182
        $region66: #{tpu_custom_call.1} parent=59 // pred_check_branch
          %960 = sbr.rel (%p958) target = $region68
        $region67: #{tpu_custom_call.1} parent=59 // pred_region
          %s961 = sand.u32 %s167, 1
          %s962 = scalar_lea.sflag [#allocation11], %s961
          %s963 = sand.u32 %s167, 1
          %s964 = smul.addr %s963, 32
          %s965 = scalar_lea.vmem [#allocation10], %s964
          %966 = dma.done %s962, 512
        $region68: #{tpu_custom_call.1} parent=59 // pred_fallthru
          _
      $region60: #{tpu_custom_call.1} parent=5 // pred_fallthru
        _
    $region6: #{tpu_custom_call.1} parent=1 // loop_footer
      %s26 = sadd.s32 1, %s22
    $region7: #{tpu_custom_call.1} parent=1 // loop_footer_branch
      %21 = sbr.rel target = $region3
    $region8: #{tpu_custom_call.1} parent=1 // loop_exit
      _
    %967 = vsyncpa [#allocation5], 1
    %s968 = scalar_lea.sflag [#allocation5], 1
    %969 = vsyncpa %s968, 1
    %970 = vsyncpa [#allocation8], 1
    %971 = vsyncpa [#allocation6], 1
    %s972 = scalar_lea.sflag [#allocation6], 1
    %973 = vsyncpa %s972, 1
    %974 = vsyncpa [#allocation11], 1
    %s975 = scalar_lea.sflag [#allocation11], 1
    %976 = vsyncpa %s975, 1

</llo_original>
